<compile_context>
chip_gen: v6e
topology: v6e:2x2x1
jax: 0.10.0
libtpu: 0.0.40
codegen_flags: <defaults>
</compile_context>

<pallas_src>
import functools

import jax
import jax.numpy as jnp
from jax.experimental import pallas as pl
from jax.experimental.pallas import tpu as pltpu


def _critic_kernel(x_ref, a_ref, w0x_ref, w0a_ref, b0_ref,
                   w1_ref, b1_ref, w2r_ref, b2_ref, out_ref):
    """One batch tile of the critic forward pass.

    Shapes (per tile):
      x_ref:(T,ns) a_ref:(T,na) w0x:(ns,h0) w0a:(na,h0) b0:(1,h0)
      w1:(h0,h1) b1:(1,h1) w2r:(1,h1) b2:(1,1) out:(T,1)
    """
    # Layer 0:  cat([x, a]) @ W0 + b0  ==  x @ W0[:ns] + a @ W0[ns:] + b0
    h = (jnp.dot(x_ref[...], w0x_ref[...], preferred_element_type=jnp.float32)
         + jnp.dot(a_ref[...], w0a_ref[...], preferred_element_type=jnp.float32)
         + b0_ref[...])
    h = jnp.maximum(h, 0.0)

    # Layer 1
    h = jnp.dot(h, w1_ref[...], preferred_element_type=jnp.float32) + b1_ref[...]
    h = jnp.maximum(h, 0.0)

    # Layer 2: output width 1 -> a [h1,1] MXU matmul would waste an entire
    # systolic pass for a single lane; do a VPU multiply + XLU reduce instead.
    q = jnp.sum(h * w2r_ref[...], axis=-1, keepdims=True) + b2_ref[...]
    out_ref[...] = q.astype(out_ref.dtype)


def _round_up(n, m):
    return ((n + m - 1) // m) * m


@functools.partial(jax.jit, static_argnames=("tile_b",))
def critic_forward(x, a, params, *, tile_b=1024):
    """x: [B, nb_states], a: [B, nb_actions]; params = ((W0,b0),(W1,b1),(W2,b2))
    with W stored as [in, out] and b as [1, out]."""
    (w0, b0), (w1, b1), (w2, b2) = params
    B, ns = x.shape
    na = a.shape[1]
    h0 = w0.shape[1]
    h1 = w1.shape[1]

    # Split W0 so the kernel never needs the concatenated [x, a] activations.
    w0x = w0[:ns]                 # (ns, h0)
    w0a = w0[ns:]                 # (na, h0)
    w2r = w2.reshape(1, h1)       # last layer as a lane-major row vector
    b0 = b0.reshape(1, h0)
    b1 = b1.reshape(1, h1)
    b2 = b2.reshape(1, 1)

    # Batch tile: multiple of 8 sublanes, capped at the (padded) batch.
    tile = _round_up(min(tile_b, _round_up(B, 8)), 8)
    padded_b = _round_up(B, tile)
    if padded_b != B:
        pad = padded_b - B
        x = jnp.pad(x, ((0, pad), (0, 0)))
        a = jnp.pad(a, ((0, pad), (0, 0)))

    grid = (padded_b // tile,)

    # Constant-index blocks: weights/biases fetched once, held resident.
    def resident(arr):
        return pl.BlockSpec(arr.shape, lambda i, _nd=arr.ndim: (0,) * _nd)

    out = pl.pallas_call(
        _critic_kernel,
        out_shape=jax.ShapeDtypeStruct((padded_b, 1), jnp.float32),
        grid=grid,
        in_specs=[
            pl.BlockSpec((tile, ns), lambda i: (i, 0)),   # x tile
            pl.BlockSpec((tile, na), lambda i: (i, 0)),   # a tile
            resident(w0x), resident(w0a), resident(b0),
            resident(w1), resident(b1),
            resident(w2r), resident(b2),
        ],
        out_specs=pl.BlockSpec((tile, 1), lambda i: (i, 0)),
        compiler_params=pltpu.CompilerParams(
            dimension_semantics=("parallel",)),   # shards batch over v7x's 2 TCs
    )(x, a, w0x, w0a, b0, w1, b1, w2r, b2)

    return out[:B]


def init_critic_params(key, nb_states, nb_actions, hiddens=(400, 300)):
    """PyTorch nn.Linear default init; W stored as [in, out], b as [1, out]."""
    dims = [nb_states + nb_actions] + list(hiddens) + [1]
    params = []
    for n_in, n_out in zip(dims[:-1], dims[1:]):
        kw, kb, key = jax.random.split(key, 3)
        bound = 1.0 / jnp.sqrt(n_in)
        w = jax.random.uniform(kw, (n_in, n_out), jnp.float32, -bound, bound)
        b = jax.random.uniform(kb, (1, n_out), jnp.float32, -bound, bound)
        params.append((w, b))
    return tuple(params)


if __name__ == "__main__":
    key = jax.random.PRNGKey(0)
    kx, ka, kp = jax.random.split(key, 3)

    nb_states, nb_actions, batch = 24, 8, 256
    hiddens = (400, 300)                       # module's default hiddens

    x = jax.random.normal(kx, (batch, nb_states), jnp.float32)
    a = jax.random.normal(ka, (batch, nb_actions), jnp.float32)
    params = init_critic_params(kp, nb_states, nb_actions, hiddens)

    # tile_b=128 -> multi-step batch grid even at this small test batch.
    out = critic_forward(x, a, params, tile_b=128)
    jax.block_until_ready(out)

    # Pure-JAX reference of the exact module math.
    (w0, b0), (w1, b1), (w2, b2) = params
    xa = jnp.concatenate([x, a], axis=1)
    h = jnp.maximum(xa @ w0 + b0, 0.0)
    h = jnp.maximum(h @ w1 + b1, 0.0)
    ref = h @ w2 + b2

    assert out.shape == (batch, 1)
    # Slightly loose tolerance: the reference's final matmul runs at XLA's
    # default TPU matmul precision while the kernel's final layer is an exact
    # f32 VPU reduce; any mismatch is bounded well below 2e-3 at these scales.
    assert jnp.allclose(out, ref, atol=2e-3, rtol=2e-3), (
        float(jnp.max(jnp.abs(out - ref))))

    print("KERNEL_OK")
</pallas_src>

<mosaic_0001>
module attributes {stable_mosaic.version = 11 : i64} {
  func.func @_critic_kernel(%arg0: i32, %arg1: memref<128x24xf32, #tpu.memory_space<vmem>>, %arg2: memref<128x8xf32, #tpu.memory_space<vmem>>, %arg3: memref<24x400xf32, #tpu.memory_space<vmem>>, %arg4: memref<8x400xf32, #tpu.memory_space<vmem>>, %arg5: memref<1x400xf32, #tpu.memory_space<vmem>>, %arg6: memref<400x300xf32, #tpu.memory_space<vmem>>, %arg7: memref<1x300xf32, #tpu.memory_space<vmem>>, %arg8: memref<1x300xf32, #tpu.memory_space<vmem>>, %arg9: memref<1x1xf32, #tpu.memory_space<vmem>>, %arg10: memref<128x1xf32, #tpu.memory_space<vmem>>) attributes {dimension_semantics = [#tpu.dimension_semantics<parallel>], iteration_bounds = array<i64: 2>, scalar_prefetch = 0 : i64, scratch_operands = 0 : i64, tpu.core_type = #tpu.core_type<tc>, window_params = [{transform_indices = @transform_0, window_bounds = array<i64: 128, 24>}, {transform_indices = @transform_1, window_bounds = array<i64: 128, 8>}, {pipeline_mode = #tpu.pipeline_mode<synchronous>, transform_indices = @transform_2, window_bounds = array<i64: 24, 400>}, {pipeline_mode = #tpu.pipeline_mode<synchronous>, transform_indices = @transform_3, window_bounds = array<i64: 8, 400>}, {pipeline_mode = #tpu.pipeline_mode<synchronous>, transform_indices = @transform_4, window_bounds = array<i64: 1, 400>}, {pipeline_mode = #tpu.pipeline_mode<synchronous>, transform_indices = @transform_5, window_bounds = array<i64: 400, 300>}, {pipeline_mode = #tpu.pipeline_mode<synchronous>, transform_indices = @transform_6, window_bounds = array<i64: 1, 300>}, {pipeline_mode = #tpu.pipeline_mode<synchronous>, transform_indices = @transform_7, window_bounds = array<i64: 1, 300>}, {pipeline_mode = #tpu.pipeline_mode<synchronous>, transform_indices = @transform_8, window_bounds = array<i64: 1, 1>}, {transform_indices = @transform_9, window_bounds = array<i64: 128, 1>}]} {
    %c0 = arith.constant 0 : index
    %c0_0 = arith.constant 0 : index
    %0 = vector.load %arg1[%c0, %c0_0] : memref<128x24xf32, #tpu.memory_space<vmem>>, vector<128x24xf32>
    %c0_1 = arith.constant 0 : index
    %c0_2 = arith.constant 0 : index
    %1 = vector.load %arg3[%c0_1, %c0_2] : memref<24x400xf32, #tpu.memory_space<vmem>>, vector<24x400xf32>
    %cst = arith.constant dense<0.000000e+00> : vector<128x400xf32>
    %2 = tpu.matmul %0, %1, %cst {dimension_numbers = #tpu.dot_dimension_numbers<[1], [0], [0], [1], [0, 0, 1, 1], [], []>} : vector<128x24xf32>, vector<24x400xf32>, vector<128x400xf32> -> vector<128x400xf32>
    %c0_3 = arith.constant 0 : index
    %c0_4 = arith.constant 0 : index
    %3 = vector.load %arg2[%c0_3, %c0_4] : memref<128x8xf32, #tpu.memory_space<vmem>>, vector<128x8xf32>
    %c0_5 = arith.constant 0 : index
    %c0_6 = arith.constant 0 : index
    %4 = vector.load %arg4[%c0_5, %c0_6] : memref<8x400xf32, #tpu.memory_space<vmem>>, vector<8x400xf32>
    %cst_7 = arith.constant dense<0.000000e+00> : vector<128x400xf32>
    %5 = tpu.matmul %3, %4, %cst_7 {dimension_numbers = #tpu.dot_dimension_numbers<[1], [0], [0], [1], [0, 0, 1, 1], [], []>} : vector<128x8xf32>, vector<8x400xf32>, vector<128x400xf32> -> vector<128x400xf32>
    %6 = arith.addf %2, %5 : vector<128x400xf32>
    %c0_8 = arith.constant 0 : index
    %c0_9 = arith.constant 0 : index
    %7 = vector.load %arg5[%c0_8, %c0_9] : memref<1x400xf32, #tpu.memory_space<vmem>>, vector<1x400xf32>
    %8 = vector.broadcast %7 : vector<1x400xf32> to vector<128x400xf32>
    %9 = arith.addf %6, %8 : vector<128x400xf32>
    %cst_10 = arith.constant 0.000000e+00 : f32
    %10 = vector.broadcast %cst_10 : f32 to vector<128x400xf32>
    %11 = arith.maximumf %9, %10 : vector<128x400xf32>
    %c0_11 = arith.constant 0 : index
    %c0_12 = arith.constant 0 : index
    %12 = vector.load %arg6[%c0_11, %c0_12] : memref<400x300xf32, #tpu.memory_space<vmem>>, vector<400x300xf32>
    %cst_13 = arith.constant dense<0.000000e+00> : vector<128x300xf32>
    %13 = tpu.matmul %11, %12, %cst_13 {dimension_numbers = #tpu.dot_dimension_numbers<[1], [0], [0], [1], [0, 0, 1, 1], [], []>} : vector<128x400xf32>, vector<400x300xf32>, vector<128x300xf32> -> vector<128x300xf32>
    %c0_14 = arith.constant 0 : index
    %c0_15 = arith.constant 0 : index
    %14 = vector.load %arg7[%c0_14, %c0_15] : memref<1x300xf32, #tpu.memory_space<vmem>>, vector<1x300xf32>
    %15 = vector.broadcast %14 : vector<1x300xf32> to vector<128x300xf32>
    %16 = arith.addf %13, %15 : vector<128x300xf32>
    %cst_16 = arith.constant 0.000000e+00 : f32
    %17 = vector.broadcast %cst_16 : f32 to vector<128x300xf32>
    %18 = arith.maximumf %16, %17 : vector<128x300xf32>
    %c0_17 = arith.constant 0 : index
    %c0_18 = arith.constant 0 : index
    %19 = vector.load %arg8[%c0_17, %c0_18] : memref<1x300xf32, #tpu.memory_space<vmem>>, vector<1x300xf32>
    %20 = vector.broadcast %19 : vector<1x300xf32> to vector<128x300xf32>
    %21 = arith.mulf %18, %20 : vector<128x300xf32>
    %cst_19 = arith.constant dense<0.000000e+00> : vector<128xf32>
    %22 = vector.multi_reduction <add>, %21, %cst_19 [1] : vector<128x300xf32> to vector<128xf32>
    %23 = vector.shape_cast %22 : vector<128xf32> to vector<128x1xf32>
    %c0_20 = arith.constant 0 : index
    %c0_21 = arith.constant 0 : index
    %24 = vector.load %arg9[%c0_20, %c0_21] : memref<1x1xf32, #tpu.memory_space<vmem>>, vector<1x1xf32>
    %25 = vector.broadcast %24 : vector<1x1xf32> to vector<128x1xf32>
    %26 = arith.addf %23, %25 : vector<128x1xf32>
    %c0_22 = arith.constant 0 : index
    %c0_23 = arith.constant 0 : index
    %27 = vector.load %arg10[%c0_22, %c0_23] : memref<128x1xf32, #tpu.memory_space<vmem>>, vector<128x1xf32>
    tpu.vector_store %arg10[%c0_22, %c0_23], %26 {strides = array<i32>} : memref<128x1xf32, #tpu.memory_space<vmem>>, vector<128x1xf32>,
    return
  }
  func.func @transform_0(%arg0: i32) -> (i32, i32) {
    %c0_i32 = arith.constant 0 : i32
    %c0_i32_0 = arith.constant 0 : i32
    return %arg0, %c0_i32 : i32, i32
  }
  func.func @transform_1(%arg0: i32) -> (i32, i32) {
    %c0_i32 = arith.constant 0 : i32
    %c0_i32_0 = arith.constant 0 : i32
    return %arg0, %c0_i32 : i32, i32
  }
  func.func @transform_2(%arg0: i32) -> (i32, i32) {
    %c0_i32 = arith.constant 0 : i32
    %c0_i32_0 = arith.constant 0 : i32
    %c0_i32_1 = arith.constant 0 : i32
    return %c0_i32, %c0_i32_0 : i32, i32
  }
  func.func @transform_3(%arg0: i32) -> (i32, i32) {
    %c0_i32 = arith.constant 0 : i32
    %c0_i32_0 = arith.constant 0 : i32
    %c0_i32_1 = arith.constant 0 : i32
    return %c0_i32, %c0_i32_0 : i32, i32
  }
  func.func @transform_4(%arg0: i32) -> (i32, i32) {
    %c0_i32 = arith.constant 0 : i32
    %c0_i32_0 = arith.constant 0 : i32
    %c0_i32_1 = arith.constant 0 : i32
    return %c0_i32, %c0_i32_0 : i32, i32
  }
  func.func @transform_5(%arg0: i32) -> (i32, i32) {
    %c0_i32 = arith.constant 0 : i32
    %c0_i32_0 = arith.constant 0 : i32
    %c0_i32_1 = arith.constant 0 : i32
    return %c0_i32, %c0_i32_0 : i32, i32
  }
  func.func @transform_6(%arg0: i32) -> (i32, i32) {
    %c0_i32 = arith.constant 0 : i32
    %c0_i32_0 = arith.constant 0 : i32
    %c0_i32_1 = arith.constant 0 : i32
    return %c0_i32, %c0_i32_0 : i32, i32
  }
  func.func @transform_7(%arg0: i32) -> (i32, i32) {
    %c0_i32 = arith.constant 0 : i32
    %c0_i32_0 = arith.constant 0 : i32
    %c0_i32_1 = arith.constant 0 : i32
    return %c0_i32, %c0_i32_0 : i32, i32
  }
  func.func @transform_8(%arg0: i32) -> (i32, i32) {
    %c0_i32 = arith.constant 0 : i32
    %c0_i32_0 = arith.constant 0 : i32
    %c0_i32_1 = arith.constant 0 : i32
    return %c0_i32, %c0_i32_0 : i32, i32
  }
  func.func @transform_9(%arg0: i32) -> (i32, i32) {
    %c0_i32 = arith.constant 0 : i32
    %c0_i32_0 = arith.constant 0 : i32
    return %arg0, %c0_i32 : i32, i32
  }
}

</mosaic_0001>

<llo_original>
// kernel: critic_forward.1
$region0: #{critic_forward.1}
  #allocation0 [shape = 'u32[]', space=smem, size = 0x4, offset = 0x4, fixed_abs, tag = 'smem constant byte address 0x4 - core index']
  #allocation1 [shape = 'u32[144,128]{1,0:T(1,128)}', space=vmem, size = 0x12000, scoped, tag = 'internal scratch']
  #allocation2 [shape = 'f32[1,1]{1,0:T(1,128)S(1)}', space=vmem, size = 0x200, scoped, tag = 'scoped memory for critic_forward.1']
  %s0 = inlined_call_operand.vmem [shape: f32[256,24], index: 0, kind: input, shape index: {}]
  %s1 = inlined_call_operand.vmem [shape: f32[256,8], index: 1, kind: input, shape index: {}]
  %s2 = inlined_call_operand.vmem [shape: f32[24,400], index: 2, kind: input, shape index: {}]
  %s3 = inlined_call_operand.vmem [shape: f32[8,400], index: 3, kind: input, shape index: {}]
  %s4 = inlined_call_operand.vmem [shape: f32[1,400], index: 4, kind: input, shape index: {}]
  %s5 = inlined_call_operand.hbm [shape: f32[400,300], index: 5, kind: input, shape index: {}]
  %s6 = inlined_call_operand.vmem [shape: f32[1,300], index: 6, kind: input, shape index: {}]
  %s7 = inlined_call_operand.vmem [shape: f32[1,300], index: 7, kind: input, shape index: {}]
  %s8 = inlined_call_operand.<no memory space> [shape: f32[1,1], index: 8, kind: input, shape index: {}]
  %s9 = inlined_call_operand.vmem [shape: f32[256,1], index: 9, kind: output, shape index: {}]
  %s10 = sld [smem:[#allocation0]]
  $region73: #{critic_forward.1} parent=0
    _
  %s12 = ssub.s32 1, %s10
  %s13 = scalar_select 0, %s12, %s10
  %v14 = vstv %s8
  %15 = vst [vmem:[#allocation2] sm:$0x1] %v14
  $region1: #{critic_forward.1} parent=0
    #allocation3 [shape = 'u8[614400]{0}', space=vmem, size = 0x96000, scoped, tag = 'input window, operand 5, single buffered']
    #allocation4 [shape = 's32[2]{0}', space=sflag, size = 0x8, scoped, tag = 'scoped memory for critic_forward.1']
    %16 = vsyncpa [#allocation4], 0
    loop: start=0, step=1, limit=4
    $region2: #{critic_forward.1} parent=1 // loop_pre_header
      _
    $region3: #{critic_forward.1} parent=1 // loop_header
      %s18 = sphi 0, %s22
      %p19 = scmp.ge.s32.totalorder %s18, 4
      %s28 = sphi 0, %s30
      %s31 = sphi 0, %s28
      %s32 = sphi 0, %s31
      %s48 = sphi 0, %s32
      %s54 = sphi 0, %s56
      %s57 = sphi 0, %s54
      %s58 = sphi 0, %s57
      %s74 = sphi 0, %s58
      %s78 = sphi 0, %s78
      %s80 = sphi 0, %s78
      %s81 = sphi 0, %s80
      %s95 = sphi 0, %s81
      %s99 = sphi 0, %s99
      %s101 = sphi 0, %s99
      %s102 = sphi 0, %s101
      %s116 = sphi 0, %s102
      %s120 = sphi 0, %s120
      %s122 = sphi 0, %s120
      %s123 = sphi 0, %s122
      %s137 = sphi 0, %s123
      %s141 = sphi 0, %s141
      %s143 = sphi 0, %s141
      %s144 = sphi 0, %s143
      %s158 = sphi 0, %s144
      %s162 = sphi 0, %s162
      %s164 = sphi 0, %s162
      %s165 = sphi 0, %s164
      %s179 = sphi 0, %s165
      %s183 = sphi 0, %s183
      %s185 = sphi 0, %s183
      %s186 = sphi 0, %s185
      %s200 = sphi 0, %s186
      %s204 = sphi 0, %s204
      %s206 = sphi 0, %s204
      %s207 = sphi 0, %s206
      %s221 = sphi 0, %s207
      %s227 = sphi 0, %s229
      %s230 = sphi 0, %s227
      %s231 = sphi 0, %s230
      %s247 = sphi 0, %s231
    $region4: #{critic_forward.1} parent=1 // loop_header_branch
      %21 = sbr.rel (%p19) target = $region8
    $region5: #{critic_forward.1} parent=1 // loop_body
      %s23 = ssub.s32 %s18, 1
      %s24 = ssub.s32 %s18, 2
      %s25 = sadd.s32 %s18, 1
      %s26 = ssub.s32 %s18, %s25
      %p27 = scmp.eq.s32.totalorder %s26, 0
      %s29 = sadd.s32 %s28, 1
      %s30 = scalar_select %p27, %s28, %s29
      %p33 = pneg %p27
      %p34 = scmp.eq.s32.totalorder %s18, 1
      %p35 = por %p33, %p34
      %p36 = scmp.ne.s32.totalorder %s28, %s31
      %p37 = scmp.eq.s32.totalorder %s18, 0
      %p38 = por %p36, %p37
      %p39 = scmp.ne.s32.totalorder %s28, %s31
      %p40 = scmp.eq.s32.totalorder %s23, 1
      %p41 = por %p39, %p40
      %p42 = scmp.ne.s32.totalorder %s31, %s32
      %p43 = scmp.eq.s32.totalorder %s23, 0
      %p44 = por %p42, %p43
      %p45 = scmp.ne.s32.totalorder %s31, %s32
      %p46 = scmp.eq.s32.totalorder %s24, 1
      %p47 = por %p45, %p46
      %p49 = scmp.ne.s32.totalorder %s32, %s48
      %p50 = scmp.eq.s32.totalorder %s24, 0
      %p51 = por %p49, %p50
      %s52 = ssub.s32 %s18, %s25
      %p53 = scmp.eq.s32.totalorder %s52, 0
      %s55 = sadd.s32 %s54, 1
      %s56 = scalar_select %p53, %s54, %s55
      %p59 = pneg %p53
      %p60 = scmp.eq.s32.totalorder %s18, 1
      %p61 = por %p59, %p60
      %p62 = scmp.ne.s32.totalorder %s54, %s57
      %p63 = scmp.eq.s32.totalorder %s18, 0
      %p64 = por %p62, %p63
      %p65 = scmp.ne.s32.totalorder %s54, %s57
      %p66 = scmp.eq.s32.totalorder %s23, 1
      %p67 = por %p65, %p66
      %p68 = scmp.ne.s32.totalorder %s57, %s58
      %p69 = scmp.eq.s32.totalorder %s23, 0
      %p70 = por %p68, %p69
      %p71 = scmp.ne.s32.totalorder %s57, %s58
      %p72 = scmp.eq.s32.totalorder %s24, 1
      %p73 = por %p71, %p72
      %p75 = scmp.ne.s32.totalorder %s58, %s74
      %p76 = scmp.eq.s32.totalorder %s24, 0
      %p77 = por %p75, %p76
      %s79 = sadd.s32 %s78, 1
      %p82 = scmp.eq.s32.totalorder %s18, 1
      %p83 = scmp.ne.s32.totalorder %s78, %s80
      %p84 = scmp.eq.s32.totalorder %s18, 0
      %p85 = por %p83, %p84
      %p86 = scmp.ne.s32.totalorder %s78, %s80
      %p87 = scmp.eq.s32.totalorder %s23, 1
      %p88 = por %p86, %p87
      %p89 = scmp.ne.s32.totalorder %s80, %s81
      %p90 = scmp.eq.s32.totalorder %s23, 0
      %p91 = por %p89, %p90
      %p92 = scmp.ne.s32.totalorder %s80, %s81
      %p93 = scmp.eq.s32.totalorder %s24, 1
      %p94 = por %p92, %p93
      %p96 = scmp.ne.s32.totalorder %s81, %s95
      %p97 = scmp.eq.s32.totalorder %s24, 0
      %p98 = por %p96, %p97
      %s100 = sadd.s32 %s99, 1
      %p103 = scmp.eq.s32.totalorder %s18, 1
      %p104 = scmp.ne.s32.totalorder %s99, %s101
      %p105 = scmp.eq.s32.totalorder %s18, 0
      %p106 = por %p104, %p105
      %p107 = scmp.ne.s32.totalorder %s99, %s101
      %p108 = scmp.eq.s32.totalorder %s23, 1
      %p109 = por %p107, %p108
      %p110 = scmp.ne.s32.totalorder %s101, %s102
      %p111 = scmp.eq.s32.totalorder %s23, 0
      %p112 = por %p110, %p111
      %p113 = scmp.ne.s32.totalorder %s101, %s102
      %p114 = scmp.eq.s32.totalorder %s24, 1
      %p115 = por %p113, %p114
      %p117 = scmp.ne.s32.totalorder %s102, %s116
      %p118 = scmp.eq.s32.totalorder %s24, 0
      %p119 = por %p117, %p118
      %s121 = sadd.s32 %s120, 1
      %p124 = scmp.eq.s32.totalorder %s18, 1
      %p125 = scmp.ne.s32.totalorder %s120, %s122
      %p126 = scmp.eq.s32.totalorder %s18, 0
      %p127 = por %p125, %p126
      %p128 = scmp.ne.s32.totalorder %s120, %s122
      %p129 = scmp.eq.s32.totalorder %s23, 1
      %p130 = por %p128, %p129
      %p131 = scmp.ne.s32.totalorder %s122, %s123
      %p132 = scmp.eq.s32.totalorder %s23, 0
      %p133 = por %p131, %p132
      %p134 = scmp.ne.s32.totalorder %s122, %s123
      %p135 = scmp.eq.s32.totalorder %s24, 1
      %p136 = por %p134, %p135
      %p138 = scmp.ne.s32.totalorder %s123, %s137
      %p139 = scmp.eq.s32.totalorder %s24, 0
      %p140 = por %p138, %p139
      %s142 = sadd.s32 %s141, 1
      %p145 = scmp.eq.s32.totalorder %s18, 1
      %p146 = scmp.ne.s32.totalorder %s141, %s143
      %p147 = scmp.eq.s32.totalorder %s18, 0
      %p148 = por %p146, %p147
      %p149 = scmp.ne.s32.totalorder %s141, %s143
      %p150 = scmp.eq.s32.totalorder %s23, 1
      %p151 = por %p149, %p150
      %p152 = scmp.ne.s32.totalorder %s143, %s144
      %p153 = scmp.eq.s32.totalorder %s23, 0
      %p154 = por %p152, %p153
      %p155 = scmp.ne.s32.totalorder %s143, %s144
      %p156 = scmp.eq.s32.totalorder %s24, 1
      %p157 = por %p155, %p156
      %p159 = scmp.ne.s32.totalorder %s144, %s158
      %p160 = scmp.eq.s32.totalorder %s24, 0
      %p161 = por %p159, %p160
      %s163 = sadd.s32 %s162, 1
      %p166 = scmp.eq.s32.totalorder %s18, 1
      %p167 = scmp.ne.s32.totalorder %s162, %s164
      %p168 = scmp.eq.s32.totalorder %s18, 0
      %p169 = por %p167, %p168
      %p170 = scmp.ne.s32.totalorder %s162, %s164
      %p171 = scmp.eq.s32.totalorder %s23, 1
      %p172 = por %p170, %p171
      %p173 = scmp.ne.s32.totalorder %s164, %s165
      %p174 = scmp.eq.s32.totalorder %s23, 0
      %p175 = por %p173, %p174
      %p176 = scmp.ne.s32.totalorder %s164, %s165
      %p177 = scmp.eq.s32.totalorder %s24, 1
      %p178 = por %p176, %p177
      %p180 = scmp.ne.s32.totalorder %s165, %s179
      %p181 = scmp.eq.s32.totalorder %s24, 0
      %p182 = por %p180, %p181
      %s184 = sadd.s32 %s183, 1
      %p187 = scmp.eq.s32.totalorder %s18, 1
      %p188 = scmp.ne.s32.totalorder %s183, %s185
      %p189 = scmp.eq.s32.totalorder %s18, 0
      %p190 = por %p188, %p189
      %p191 = scmp.ne.s32.totalorder %s183, %s185
      %p192 = scmp.eq.s32.totalorder %s23, 1
      %p193 = por %p191, %p192
      %p194 = scmp.ne.s32.totalorder %s185, %s186
      %p195 = scmp.eq.s32.totalorder %s23, 0
      %p196 = por %p194, %p195
      %p197 = scmp.ne.s32.totalorder %s185, %s186
      %p198 = scmp.eq.s32.totalorder %s24, 1
      %p199 = por %p197, %p198
      %p201 = scmp.ne.s32.totalorder %s186, %s200
      %p202 = scmp.eq.s32.totalorder %s24, 0
      %p203 = por %p201, %p202
      %s205 = sadd.s32 %s204, 1
      %p208 = scmp.eq.s32.totalorder %s18, 1
      %p209 = scmp.ne.s32.totalorder %s204, %s206
      %p210 = scmp.eq.s32.totalorder %s18, 0
      %p211 = por %p209, %p210
      %p212 = scmp.ne.s32.totalorder %s204, %s206
      %p213 = scmp.eq.s32.totalorder %s23, 1
      %p214 = por %p212, %p213
      %p215 = scmp.ne.s32.totalorder %s206, %s207
      %p216 = scmp.eq.s32.totalorder %s23, 0
      %p217 = por %p215, %p216
      %p218 = scmp.ne.s32.totalorder %s206, %s207
      %p219 = scmp.eq.s32.totalorder %s24, 1
      %p220 = por %p218, %p219
      %p222 = scmp.ne.s32.totalorder %s207, %s221
      %p223 = scmp.eq.s32.totalorder %s24, 0
      %p224 = por %p222, %p223
      %s225 = ssub.s32 %s18, %s25
      %p226 = scmp.eq.s32.totalorder %s225, 0
      %s228 = sadd.s32 %s227, 1
      %s229 = scalar_select %p226, %s227, %s228
      %p232 = pneg %p226
      %p233 = scmp.eq.s32.totalorder %s18, 1
      %p234 = por %p232, %p233
      %p235 = scmp.ne.s32.totalorder %s227, %s230
      %p236 = scmp.eq.s32.totalorder %s18, 0
      %p237 = por %p235, %p236
      %p238 = scmp.ne.s32.totalorder %s227, %s230
      %p239 = scmp.eq.s32.totalorder %s23, 1
      %p240 = por %p238, %p239
      %p241 = scmp.ne.s32.totalorder %s230, %s231
      %p242 = scmp.eq.s32.totalorder %s23, 0
      %p243 = por %p241, %p242
      %p244 = scmp.ne.s32.totalorder %s230, %s231
      %p245 = scmp.eq.s32.totalorder %s24, 1
      %p246 = por %p244, %p245
      %p248 = scmp.ne.s32.totalorder %s231, %s247
      %p249 = scmp.eq.s32.totalorder %s24, 0
      %p250 = por %p248, %p249
      %p251 = scmp.le.s32.totalorder 1, %s18
      %p252 = scmp.lt.s32.totalorder %s18, 3
      %p253 = pnand %p251, %p252
      %p254 = pneg %p253
      // Predicated region
      $region9: #{critic_forward.1} parent=5 // pred_check
        _
      $region10: #{critic_forward.1} parent=5 // pred_check_branch
        %256 = sbr.rel (%p253) target = $region12
      $region11: #{critic_forward.1} parent=5 // pred_region
        %s257 = ssub.s32 %s18, 1
        // Predicated region
        $region13: #{critic_forward.1} parent=11 // pred_check
          %p258 = pneg %p91
        $region14: #{critic_forward.1} parent=11 // pred_check_branch
          %260 = sbr.rel (%p258) target = $region16
        $region15: #{critic_forward.1} parent=11 // pred_region
          _
        $region16: #{critic_forward.1} parent=11 // pred_fallthru
          _
        // Predicated region
        $region17: #{critic_forward.1} parent=11 // pred_check
          %p261 = pneg %p112
        $region18: #{critic_forward.1} parent=11 // pred_check_branch
          %263 = sbr.rel (%p261) target = $region20
        $region19: #{critic_forward.1} parent=11 // pred_region
          _
        $region20: #{critic_forward.1} parent=11 // pred_fallthru
          _
        // Predicated region
        $region21: #{critic_forward.1} parent=11 // pred_check
          %p264 = pneg %p133
        $region22: #{critic_forward.1} parent=11 // pred_check_branch
          %266 = sbr.rel (%p264) target = $region24
        $region23: #{critic_forward.1} parent=11 // pred_region
          _
        $region24: #{critic_forward.1} parent=11 // pred_fallthru
          _
        // Predicated region
        $region25: #{critic_forward.1} parent=11 // pred_check
          %p267 = pneg %p154
        $region26: #{critic_forward.1} parent=11 // pred_check_branch
          %269 = sbr.rel (%p267) target = $region28
        $region27: #{critic_forward.1} parent=11 // pred_region
          %s271 = ssub.s32 19200, 19200
          %272 = vsyncadd [#allocation4], %s271
          %s273 = sshll.u32 [#allocation3], 4
          %s274 = int_to_ptr.vmem [resolvable:$true] %s273
          %279 = dma.hbm_to_vmem [thread:$0]  %s5, 19200, %s274, [#allocation4], 384, 384, 24
        $region28: #{critic_forward.1} parent=11 // pred_fallthru
          _
        // Predicated region
        $region29: #{critic_forward.1} parent=11 // pred_check
          %p280 = pneg %p175
        $region30: #{critic_forward.1} parent=11 // pred_check_branch
          %282 = sbr.rel (%p280) target = $region32
        $region31: #{critic_forward.1} parent=11 // pred_region
          _
        $region32: #{critic_forward.1} parent=11 // pred_fallthru
          _
        // Predicated region
        $region33: #{critic_forward.1} parent=11 // pred_check
          %p283 = pneg %p196
        $region34: #{critic_forward.1} parent=11 // pred_check_branch
          %285 = sbr.rel (%p283) target = $region36
        $region35: #{critic_forward.1} parent=11 // pred_region
          _
        $region36: #{critic_forward.1} parent=11 // pred_fallthru
          _
        // Predicated region
        $region37: #{critic_forward.1} parent=11 // pred_check
          %p286 = pneg %p217
        $region38: #{critic_forward.1} parent=11 // pred_check_branch
          %288 = sbr.rel (%p286) target = $region40
        $region39: #{critic_forward.1} parent=11 // pred_region
          _
        $region40: #{critic_forward.1} parent=11 // pred_fallthru
          _
      $region12: #{critic_forward.1} parent=5 // pred_fallthru
        _
      %p289 = scmp.lt.s32.totalorder %s18, 2
      // Predicated region
      $region41: #{critic_forward.1} parent=5 // pred_check
        %p290 = pneg %p289
      $region42: #{critic_forward.1} parent=5 // pred_check_branch
        %292 = sbr.rel (%p290) target = $region44
      $region43: #{critic_forward.1} parent=5 // pred_region
        // Predicated region
        $region45: #{critic_forward.1} parent=43 // pred_check
          %p293 = pneg %p38
        $region46: #{critic_forward.1} parent=43 // pred_check_branch
          %295 = sbr.rel (%p293) target = $region48
        $region47: #{critic_forward.1} parent=43 // pred_region
          %s296 = smul.u32 16, %s18
          %p297 = scmp.lt.s32.totalorder %s296, 31
          %s298 = scalar_select %p297, %s296, 31
          %s299 = smul.addr %s298, 8
          %s300 = scalar_lea.vmem %s0, %s299
          %s301 = smul.u32 16, %s18
        $region48: #{critic_forward.1} parent=43 // pred_fallthru
          _
        // Predicated region
        $region49: #{critic_forward.1} parent=43 // pred_check
          %p302 = pneg %p64
        $region50: #{critic_forward.1} parent=43 // pred_check_branch
          %304 = sbr.rel (%p302) target = $region52
        $region51: #{critic_forward.1} parent=43 // pred_region
          %s305 = smul.u32 16, %s18
          %p306 = scmp.lt.s32.totalorder %s305, 31
          %s307 = scalar_select %p306, %s305, 31
          %s308 = smul.addr %s307, 8
          %s309 = scalar_lea.vmem %s1, %s308
          %s310 = smul.u32 16, %s18
        $region52: #{critic_forward.1} parent=43 // pred_fallthru
          _
      $region44: #{critic_forward.1} parent=5 // pred_fallthru
        _
      %p311 = scmp.le.s32.totalorder 1, %s18
      %p312 = scmp.lt.s32.totalorder %s18, 3
      %p313 = pnand %p311, %p312
      %p314 = pneg %p313
      // Predicated region
      $region53: #{critic_forward.1} parent=5 // pred_check
        _
      $region54: #{critic_forward.1} parent=5 // pred_check_branch
        %316 = sbr.rel (%p313) target = $region56
      $region55: #{critic_forward.1} parent=5 // pred_region
        %s317 = ssub.s32 %s18, 1
        // Predicated region
        $region57: #{critic_forward.1} parent=55 // pred_check
          %p318 = pneg %p154
        $region58: #{critic_forward.1} parent=55 // pred_check_branch
          %320 = sbr.rel (%p318) target = $region60
        $region59: #{critic_forward.1} parent=55 // pred_region
          %321 = dma.done [#allocation4], 19200
        $region60: #{critic_forward.1} parent=55 // pred_fallthru
          _
        %s322 = smul.u32 16, %s23
        %p323 = scmp.lt.s32.totalorder %s322, 31
        %s324 = scalar_select %p323, %s322, 31
        %s325 = smul.addr %s324, 8
        %s326 = scalar_lea.vmem %s0, %s325
        %p327 = pneg %p44
        %p328 = pneg %p41
        %s329 = smul.u32 16, %s23
        %p330 = scmp.lt.s32.totalorder %s329, 31
        %s331 = scalar_select %p330, %s329, 31
        %s332 = smul.addr %s331, 8
        %s333 = scalar_lea.vmem %s1, %s332
        %p334 = pneg %p70
        %p335 = pneg %p67
        %p336 = pneg %p91
        %p337 = pneg %p88
        %p338 = pneg %p112
        %p339 = pneg %p109
        %p340 = pneg %p133
        %p341 = pneg %p130
        %p342 = pneg %p154
        %p343 = pneg %p151
        %p344 = pneg %p175
        %p345 = pneg %p172
        %p346 = pneg %p196
        %p347 = pneg %p193
        %p348 = pneg %p217
        %p349 = pneg %p214
        %p350 = pneg %p243
        %p351 = pneg %p240
        %s352 = smul.u32 16, %s23
        %p353 = scmp.lt.s32.totalorder %s352, 31
        %s354 = scalar_select %p353, %s352, 31
        %s355 = smul.addr %s354, 8
        %s356 = scalar_lea.vmem %s9, %s355
        %s357 = smul.u32 16, %s23
        %p358 = scmp.lt.s32.totalorder %s357, 31
        %s359 = scalar_select %p358, %s357, 31
        %s360 = smul.addr %s359, 8
        %s361 = scalar_lea.vmem %s0, %s360
        %s362 = smul.u32 16, %s23
        %s363 = smul.u32 16, %s23
        %p364 = scmp.lt.s32.totalorder %s363, 31
        %s365 = scalar_select %p364, %s363, 31
        %s366 = smul.addr %s365, 8
        %s367 = scalar_lea.vmem %s1, %s366
        %s368 = smul.u32 16, %s23
        %s369 = smul.u32 16, %s23
        %p370 = scmp.lt.s32.totalorder %s369, 31
        %s371 = scalar_select %p370, %s369, 31
        %s372 = smul.addr %s371, 8
        %s373 = scalar_lea.vmem %s9, %s372
        %s374 = smul.u32 16, %s23
        %v375 = vld [vmem:[%s361] sm:$0xff]
        %v376 = vld [vmem:[%s361 + $0x8] sm:$0xff]
        %v377 = vld [vmem:[%s361 + $0x10] sm:$0xff]
        %v378 = vld [vmem:[%s361 + $0x18] sm:$0xff]
        %v379 = vld [vmem:[%s361 + $0x20] sm:$0xff]
        %v380 = vld [vmem:[%s361 + $0x28] sm:$0xff]
        %v381 = vld [vmem:[%s361 + $0x30] sm:$0xff]
        %v382 = vld [vmem:[%s361 + $0x38] sm:$0xff]
        %v383 = vld [vmem:[%s361 + $0x40] sm:$0xff]
        %v384 = vld [vmem:[%s361 + $0x48] sm:$0xff]
        %v385 = vld [vmem:[%s361 + $0x50] sm:$0xff]
        %v386 = vld [vmem:[%s361 + $0x58] sm:$0xff]
        %v387 = vld [vmem:[%s361 + $0x60] sm:$0xff]
        %v388 = vld [vmem:[%s361 + $0x68] sm:$0xff]
        %v389 = vld [vmem:[%s361 + $0x70] sm:$0xff]
        %v390 = vld [vmem:[%s361 + $0x78] sm:$0xff]
        %v391 = vld [vmem:[%s2] sm:$0xff]
        %v392 = vld [vmem:[%s2 + $0x8] sm:$0xff]
        %v393 = vld [vmem:[%s2 + $0x10] sm:$0xff]
        %v394 = vld [vmem:[%s2 + $0x18] sm:$0xff]
        %v395 = vld [vmem:[%s2 + $0x20] sm:$0xff]
        %v396 = vld [vmem:[%s2 + $0x28] sm:$0xff]
        %v397 = vld [vmem:[%s2 + $0x30] sm:$0xff]
        %v398 = vld [vmem:[%s2 + $0x38] sm:$0xff]
        %v399 = vld [vmem:[%s2 + $0x40] sm:$0xff]
        %v400 = vld [vmem:[%s2 + $0x48] sm:$0xff]
        %v401 = vld [vmem:[%s2 + $0x50] sm:$0xff]
        %v402 = vld [vmem:[%s2 + $0x58] sm:$0xff]
        %v403 = vld [vmem:[%s367] sm:$0xff]
        %v404 = vld [vmem:[%s367 + $0x8] sm:$0xff]
        %v405 = vld [vmem:[%s367 + $0x10] sm:$0xff]
        %v406 = vld [vmem:[%s367 + $0x18] sm:$0xff]
        %v407 = vld [vmem:[%s367 + $0x20] sm:$0xff]
        %v408 = vld [vmem:[%s367 + $0x28] sm:$0xff]
        %v409 = vld [vmem:[%s367 + $0x30] sm:$0xff]
        %v410 = vld [vmem:[%s367 + $0x38] sm:$0xff]
        %v411 = vld [vmem:[%s367 + $0x40] sm:$0xff]
        %v412 = vld [vmem:[%s367 + $0x48] sm:$0xff]
        %v413 = vld [vmem:[%s367 + $0x50] sm:$0xff]
        %v414 = vld [vmem:[%s367 + $0x58] sm:$0xff]
        %v415 = vld [vmem:[%s367 + $0x60] sm:$0xff]
        %v416 = vld [vmem:[%s367 + $0x68] sm:$0xff]
        %v417 = vld [vmem:[%s367 + $0x70] sm:$0xff]
        %v418 = vld [vmem:[%s367 + $0x78] sm:$0xff]
        %v419 = vld [vmem:[%s3] sm:$0xff]
        %v420 = vld [vmem:[%s3 + $0x8] sm:$0xff]
        %v421 = vld [vmem:[%s3 + $0x10] sm:$0xff]
        %v422 = vld [vmem:[%s3 + $0x18] sm:$0xff]
        %vm423 = vcmask 64512
        %v425 = vsel %vm423, %v403, 0
        %v428 = vsel %vm423, %v404, 0
        %v431 = vsel %vm423, %v405, 0
        %v434 = vsel %vm423, %v406, 0
        %v437 = vsel %vm423, %v407, 0
        %v440 = vsel %vm423, %v408, 0
        %v443 = vsel %vm423, %v409, 0
        %v446 = vsel %vm423, %v410, 0
        %v449 = vsel %vm423, %v411, 0
        %v452 = vsel %vm423, %v412, 0
        %v455 = vsel %vm423, %v413, 0
        %v458 = vsel %vm423, %v414, 0
        %v461 = vsel %vm423, %v415, 0
        %v464 = vsel %vm423, %v416, 0
        %v467 = vsel %vm423, %v417, 0
        %v470 = vsel %vm423, %v418, 0
        %472 = vmatprep.subr.mxu0 0.0
        %473 = vmatpush1.msra.mxu0 0.0
        %474 = vmatprep.subr.mxu0 0.0
        %475 = vmatpush1.msra.mxu0 0.0
        %476 = vmatprep.subr.mxu0 0.0
        %477 = vmatpush1.msra.mxu0 0.0
        %478 = vmatprep.subr.mxu0 0.0
        %479 = vmatpush1.msra.mxu0 0.0
        %480 = vmatprep.subr.mxu0 0.0
        %481 = vmatpush1.msra.mxu0 0.0
        %482 = vmatprep.subr.mxu0 0.0
        %483 = vmatpush1.msra.mxu0 0.0
        %484 = vmatprep.subr.mxu0 0.0
        %485 = vmatpush1.msra.mxu0 0.0
        %486 = vmatprep.subr.mxu0 0.0
        %487 = vmatpush1.msra.mxu0 0.0
        %488 = vmatprep.subr.mxu0 0.0
        %489 = vmatpush1.msra.mxu0 0.0
        %490 = vmatprep.subr.mxu0 0.0
        %491 = vmatpush1.msra.mxu0 0.0
        %492 = vmatprep.subr.mxu0 0.0
        %493 = vmatpush1.msra.mxu0 0.0
        %494 = vmatprep.subr.mxu0 0.0
        %495 = vmatpush1.msra.mxu0 0.0
        %496 = vmatprep.subr.mxu0 0.0
        %497 = vmatpush1.msra.mxu0 0.0
        %498 = vmatprep.subr.mxu0 0.0
        %499 = vmatpush1.msra.mxu0 0.0
        %500 = vmatprep.subr.mxu0 0.0
        %501 = vmatpush1.msra.mxu0 0.0
        %502 = vmatprep.subr.mxu0 %v420
        %503 = vmatpush1.msra.mxu0 %v419
        %504 = vmatprep.subr.mxu0 0.0
        %505 = vmatpush2.msra.mxu0 0.0
        %506 = vmatprep.subr.mxu0 0.0
        %507 = vmatpush2.msra.mxu0 0.0
        %508 = vmatprep.subr.mxu0 0.0
        %509 = vmatpush2.msra.mxu0 0.0
        %510 = vmatprep.subr.mxu0 0.0
        %511 = vmatpush2.msra.mxu0 0.0
        %512 = vmatprep.subr.mxu0 0.0
        %513 = vmatpush2.msra.mxu0 0.0
        %514 = vmatprep.subr.mxu0 0.0
        %515 = vmatpush2.msra.mxu0 0.0
        %516 = vmatprep.subr.mxu0 0.0
        %517 = vmatpush2.msra.mxu0 0.0
        %518 = vmatprep.subr.mxu0 0.0
        %519 = vmatpush2.msra.mxu0 0.0
        %520 = vmatprep.subr.mxu0 0.0
        %521 = vmatpush2.msra.mxu0 0.0
        %522 = vmatprep.subr.mxu0 0.0
        %523 = vmatpush2.msra.mxu0 0.0
        %524 = vmatprep.subr.mxu0 0.0
        %525 = vmatpush2.msra.mxu0 0.0
        %526 = vmatprep.subr.mxu0 0.0
        %527 = vmatpush2.msra.mxu0 0.0
        %528 = vmatprep.subr.mxu0 0.0
        %529 = vmatpush2.msra.mxu0 0.0
        %530 = vmatprep.subr.mxu0 0.0
        %531 = vmatpush2.msra.mxu0 0.0
        %532 = vmatprep.subr.mxu0 0.0
        %533 = vmatpush2.msra.mxu0 0.0
        %534 = vmatprep.subr.mxu0 0.0
        %535 = vmatpush2.msra.mxu0 0.0
        %536 = vmatprep.mubr.f32.mxu0 0.0
        %537 = vmatmul.mubr.f32.gmra.mxu0 %v425
        %v538 = vpop.f32.mrf.mxu0
        %v539 = vadd.f32 0.0, %v538
        %v540 = vpop.f32.mrf.mxu0
        %v541 = vadd.f32 0.0, %v540
        %542 = vmatprep.mubr.f32.mxu0 0.0
        %543 = vmatmul.mubr.f32.gmra.mxu0 %v428
        %v544 = vpop.f32.mrf.mxu0
        %v545 = vadd.f32 0.0, %v544
        %v546 = vpop.f32.mrf.mxu0
        %v547 = vadd.f32 0.0, %v546
        %548 = vmatprep.mubr.f32.mxu0 0.0
        %549 = vmatmul.mubr.f32.gmra.mxu0 %v431
        %v550 = vpop.f32.mrf.mxu0
        %v551 = vadd.f32 0.0, %v550
        %v552 = vpop.f32.mrf.mxu0
        %v553 = vadd.f32 0.0, %v552
        %554 = vmatprep.mubr.f32.mxu0 0.0
        %555 = vmatmul.mubr.f32.gmra.mxu0 %v434
        %v556 = vpop.f32.mrf.mxu0
        %v557 = vadd.f32 0.0, %v556
        %v558 = vpop.f32.mrf.mxu0
        %v559 = vadd.f32 0.0, %v558
        %560 = vmatprep.mubr.f32.mxu0 0.0
        %561 = vmatmul.mubr.f32.gmra.mxu0 %v437
        %v562 = vpop.f32.mrf.mxu0
        %v563 = vadd.f32 0.0, %v562
        %v564 = vpop.f32.mrf.mxu0
        %v565 = vadd.f32 0.0, %v564
        %566 = vmatprep.mubr.f32.mxu0 0.0
        %567 = vmatmul.mubr.f32.gmra.mxu0 %v440
        %v568 = vpop.f32.mrf.mxu0
        %v569 = vadd.f32 0.0, %v568
        %v570 = vpop.f32.mrf.mxu0
        %v571 = vadd.f32 0.0, %v570
        %572 = vmatprep.mubr.f32.mxu0 0.0
        %573 = vmatmul.mubr.f32.gmra.mxu0 %v443
        %v574 = vpop.f32.mrf.mxu0
        %v575 = vadd.f32 0.0, %v574
        %v576 = vpop.f32.mrf.mxu0
        %v577 = vadd.f32 0.0, %v576
        %578 = vmatprep.mubr.f32.mxu0 0.0
        %579 = vmatmul.mubr.f32.gmra.mxu0 %v446
        %v580 = vpop.f32.mrf.mxu0
        %v581 = vadd.f32 0.0, %v580
        %v582 = vpop.f32.mrf.mxu0
        %v583 = vadd.f32 0.0, %v582
        %584 = vmatprep.mubr.f32.mxu0 0.0
        %585 = vmatmul.mubr.f32.gmra.mxu0 %v449
        %v586 = vpop.f32.mrf.mxu0
        %v587 = vadd.f32 0.0, %v586
        %v588 = vpop.f32.mrf.mxu0
        %v589 = vadd.f32 0.0, %v588
        %590 = vmatprep.mubr.f32.mxu0 0.0
        %591 = vmatmul.mubr.f32.gmra.mxu0 %v452
        %v592 = vpop.f32.mrf.mxu0
        %v593 = vadd.f32 0.0, %v592
        %v594 = vpop.f32.mrf.mxu0
        %v595 = vadd.f32 0.0, %v594
        %596 = vmatprep.mubr.f32.mxu0 0.0
        %597 = vmatmul.mubr.f32.gmra.mxu0 %v455
        %v598 = vpop.f32.mrf.mxu0
        %v599 = vadd.f32 0.0, %v598
        %v600 = vpop.f32.mrf.mxu0
        %v601 = vadd.f32 0.0, %v600
        %602 = vmatprep.mubr.f32.mxu0 0.0
        %603 = vmatmul.mubr.f32.gmra.mxu0 %v458
        %v604 = vpop.f32.mrf.mxu0
        %v605 = vadd.f32 0.0, %v604
        %v606 = vpop.f32.mrf.mxu0
        %v607 = vadd.f32 0.0, %v606
        %608 = vmatprep.mubr.f32.mxu0 0.0
        %609 = vmatmul.mubr.f32.gmra.mxu0 %v461
        %v610 = vpop.f32.mrf.mxu0
        %v611 = vadd.f32 0.0, %v610
        %v612 = vpop.f32.mrf.mxu0
        %v613 = vadd.f32 0.0, %v612
        %614 = vmatprep.mubr.f32.mxu0 0.0
        %615 = vmatmul.mubr.f32.gmra.mxu0 %v464
        %v616 = vpop.f32.mrf.mxu0
        %v617 = vadd.f32 0.0, %v616
        %v618 = vpop.f32.mrf.mxu0
        %v619 = vadd.f32 0.0, %v618
        %620 = vmatprep.mubr.f32.mxu0 0.0
        %621 = vmatmul.mubr.f32.gmra.mxu0 %v467
        %v622 = vpop.f32.mrf.mxu0
        %v623 = vadd.f32 0.0, %v622
        %v624 = vpop.f32.mrf.mxu0
        %v625 = vadd.f32 0.0, %v624
        %626 = vmatprep.mubr.f32.mxu0 0.0
        %627 = vmatmul.mubr.f32.gmra.mxu0 %v470
        %v628 = vpop.f32.mrf.mxu0
        %v629 = vadd.f32 0.0, %v628
        %v630 = vpop.f32.mrf.mxu0
        %v631 = vadd.f32 0.0, %v630
        %632 = vdwg.mxu0
        %633 = vmatprep.subr.mxu0 0.0
        %634 = vmatpush1.msra.mxu0 0.0
        %635 = vmatprep.subr.mxu0 0.0
        %636 = vmatpush1.msra.mxu0 0.0
        %637 = vmatprep.subr.mxu0 0.0
        %638 = vmatpush1.msra.mxu0 0.0
        %639 = vmatprep.subr.mxu0 0.0
        %640 = vmatpush1.msra.mxu0 0.0
        %641 = vmatprep.subr.mxu0 0.0
        %642 = vmatpush1.msra.mxu0 0.0
        %643 = vmatprep.subr.mxu0 0.0
        %644 = vmatpush1.msra.mxu0 0.0
        %645 = vmatprep.subr.mxu0 0.0
        %646 = vmatpush1.msra.mxu0 0.0
        %647 = vmatprep.subr.mxu0 0.0
        %648 = vmatpush1.msra.mxu0 0.0
        %649 = vmatprep.subr.mxu0 0.0
        %650 = vmatpush1.msra.mxu0 0.0
        %651 = vmatprep.subr.mxu0 0.0
        %652 = vmatpush1.msra.mxu0 0.0
        %653 = vmatprep.subr.mxu0 0.0
        %654 = vmatpush1.msra.mxu0 0.0
        %655 = vmatprep.subr.mxu0 0.0
        %656 = vmatpush1.msra.mxu0 0.0
        %657 = vmatprep.subr.mxu0 0.0
        %658 = vmatpush1.msra.mxu0 0.0
        %659 = vmatprep.subr.mxu0 0.0
        %660 = vmatpush1.msra.mxu0 0.0
        %661 = vmatprep.subr.mxu0 0.0
        %662 = vmatpush1.msra.mxu0 0.0
        %663 = vmatprep.subr.mxu0 %v422
        %664 = vmatpush1.msra.mxu0 %v421
        %665 = vmatprep.subr.mxu0 0.0
        %666 = vmatpush2.msra.mxu0 0.0
        %667 = vmatprep.subr.mxu0 0.0
        %668 = vmatpush2.msra.mxu0 0.0
        %669 = vmatprep.subr.mxu0 0.0
        %670 = vmatpush2.msra.mxu0 0.0
        %671 = vmatprep.subr.mxu0 0.0
        %672 = vmatpush2.msra.mxu0 0.0
        %673 = vmatprep.subr.mxu0 0.0
        %674 = vmatpush2.msra.mxu0 0.0
        %675 = vmatprep.subr.mxu0 0.0
        %676 = vmatpush2.msra.mxu0 0.0
        %677 = vmatprep.subr.mxu0 0.0
        %678 = vmatpush2.msra.mxu0 0.0
        %679 = vmatprep.subr.mxu0 0.0
        %680 = vmatpush2.msra.mxu0 0.0
        %681 = vmatprep.subr.mxu0 0.0
        %682 = vmatpush2.msra.mxu0 0.0
        %683 = vmatprep.subr.mxu0 0.0
        %684 = vmatpush2.msra.mxu0 0.0
        %685 = vmatprep.subr.mxu0 0.0
        %686 = vmatpush2.msra.mxu0 0.0
        %687 = vmatprep.subr.mxu0 0.0
        %688 = vmatpush2.msra.mxu0 0.0
        %689 = vmatprep.subr.mxu0 0.0
        %690 = vmatpush2.msra.mxu0 0.0
        %691 = vmatprep.subr.mxu0 0.0
        %692 = vmatpush2.msra.mxu0 0.0
        %693 = vmatprep.subr.mxu0 0.0
        %694 = vmatpush2.msra.mxu0 0.0
        %695 = vmatprep.subr.mxu0 0.0
        %696 = vmatpush2.msra.mxu0 0.0
        %697 = vmatprep.mubr.f32.mxu0 0.0
        %698 = vmatmul.mubr.f32.gmra.mxu0 %v425
        %v699 = vpop.f32.mrf.mxu0
        %v700 = vadd.f32 0.0, %v699
        %v701 = vpop.f32.mrf.mxu0
        %v702 = vadd.f32 0.0, %v701
        %703 = vmatprep.mubr.f32.mxu0 0.0
        %704 = vmatmul.mubr.f32.gmra.mxu0 %v428
        %v705 = vpop.f32.mrf.mxu0
        %v706 = vadd.f32 0.0, %v705
        %v707 = vpop.f32.mrf.mxu0
        %v708 = vadd.f32 0.0, %v707
        %709 = vmatprep.mubr.f32.mxu0 0.0
        %710 = vmatmul.mubr.f32.gmra.mxu0 %v431
        %v711 = vpop.f32.mrf.mxu0
        %v712 = vadd.f32 0.0, %v711
        %v713 = vpop.f32.mrf.mxu0
        %v714 = vadd.f32 0.0, %v713
        %715 = vmatprep.mubr.f32.mxu0 0.0
        %716 = vmatmul.mubr.f32.gmra.mxu0 %v434
        %v717 = vpop.f32.mrf.mxu0
        %v718 = vadd.f32 0.0, %v717
        %v719 = vpop.f32.mrf.mxu0
        %v720 = vadd.f32 0.0, %v719
        %721 = vmatprep.mubr.f32.mxu0 0.0
        %722 = vmatmul.mubr.f32.gmra.mxu0 %v437
        %v723 = vpop.f32.mrf.mxu0
        %v724 = vadd.f32 0.0, %v723
        %v725 = vpop.f32.mrf.mxu0
        %v726 = vadd.f32 0.0, %v725
        %727 = vmatprep.mubr.f32.mxu0 0.0
        %728 = vmatmul.mubr.f32.gmra.mxu0 %v440
        %v729 = vpop.f32.mrf.mxu0
        %v730 = vadd.f32 0.0, %v729
        %v731 = vpop.f32.mrf.mxu0
        %v732 = vadd.f32 0.0, %v731
        %733 = vmatprep.mubr.f32.mxu0 0.0
        %734 = vmatmul.mubr.f32.gmra.mxu0 %v443
        %v735 = vpop.f32.mrf.mxu0
        %v736 = vadd.f32 0.0, %v735
        %v737 = vpop.f32.mrf.mxu0
        %v738 = vadd.f32 0.0, %v737
        %739 = vmatprep.mubr.f32.mxu0 0.0
        %740 = vmatmul.mubr.f32.gmra.mxu0 %v446
        %v741 = vpop.f32.mrf.mxu0
        %v742 = vadd.f32 0.0, %v741
        %v743 = vpop.f32.mrf.mxu0
        %v744 = vadd.f32 0.0, %v743
        %745 = vmatprep.mubr.f32.mxu0 0.0
        %746 = vmatmul.mubr.f32.gmra.mxu0 %v449
        %v747 = vpop.f32.mrf.mxu0
        %v748 = vadd.f32 0.0, %v747
        %v749 = vpop.f32.mrf.mxu0
        %v750 = vadd.f32 0.0, %v749
        %751 = vmatprep.mubr.f32.mxu0 0.0
        %752 = vmatmul.mubr.f32.gmra.mxu0 %v452
        %v753 = vpop.f32.mrf.mxu0
        %v754 = vadd.f32 0.0, %v753
        %v755 = vpop.f32.mrf.mxu0
        %v756 = vadd.f32 0.0, %v755
        %757 = vmatprep.mubr.f32.mxu0 0.0
        %758 = vmatmul.mubr.f32.gmra.mxu0 %v455
        %v759 = vpop.f32.mrf.mxu0
        %v760 = vadd.f32 0.0, %v759
        %v761 = vpop.f32.mrf.mxu0
        %v762 = vadd.f32 0.0, %v761
        %763 = vmatprep.mubr.f32.mxu0 0.0
        %764 = vmatmul.mubr.f32.gmra.mxu0 %v458
        %v765 = vpop.f32.mrf.mxu0
        %v766 = vadd.f32 0.0, %v765
        %v767 = vpop.f32.mrf.mxu0
        %v768 = vadd.f32 0.0, %v767
        %769 = vmatprep.mubr.f32.mxu0 0.0
        %770 = vmatmul.mubr.f32.gmra.mxu0 %v461
        %v771 = vpop.f32.mrf.mxu0
        %v772 = vadd.f32 0.0, %v771
        %v773 = vpop.f32.mrf.mxu0
        %v774 = vadd.f32 0.0, %v773
        %775 = vmatprep.mubr.f32.mxu0 0.0
        %776 = vmatmul.mubr.f32.gmra.mxu0 %v464
        %v777 = vpop.f32.mrf.mxu0
        %v778 = vadd.f32 0.0, %v777
        %v779 = vpop.f32.mrf.mxu0
        %v780 = vadd.f32 0.0, %v779
        %781 = vmatprep.mubr.f32.mxu0 0.0
        %782 = vmatmul.mubr.f32.gmra.mxu0 %v467
        %v783 = vpop.f32.mrf.mxu0
        %v784 = vadd.f32 0.0, %v783
        %v785 = vpop.f32.mrf.mxu0
        %v786 = vadd.f32 0.0, %v785
        %787 = vmatprep.mubr.f32.mxu0 0.0
        %788 = vmatmul.mubr.f32.gmra.mxu0 %v470
        %v789 = vpop.f32.mrf.mxu0
        %v790 = vadd.f32 0.0, %v789
        %v791 = vpop.f32.mrf.mxu0
        %v792 = vadd.f32 0.0, %v791
        %793 = vdwg.mxu0
        %vm794 = vcmask 195584
        %v796 = vsel %vm794, %v375, 0
        %v799 = vsel %vm794, %v376, 0
        %v802 = vsel %vm794, %v377, 0
        %v805 = vsel %vm794, %v378, 0
        %v808 = vsel %vm794, %v379, 0
        %v811 = vsel %vm794, %v380, 0
        %v814 = vsel %vm794, %v381, 0
        %v817 = vsel %vm794, %v382, 0
        %v820 = vsel %vm794, %v383, 0
        %v823 = vsel %vm794, %v384, 0
        %v826 = vsel %vm794, %v385, 0
        %v829 = vsel %vm794, %v386, 0
        %v832 = vsel %vm794, %v387, 0
        %v835 = vsel %vm794, %v388, 0
        %v838 = vsel %vm794, %v389, 0
        %v841 = vsel %vm794, %v390, 0
        %843 = vmatprep.subr.mxu0 0.0
        %844 = vmatpush1.msra.mxu0 0.0
        %845 = vmatprep.subr.mxu0 0.0
        %846 = vmatpush1.msra.mxu0 0.0
        %847 = vmatprep.subr.mxu0 0.0
        %848 = vmatpush1.msra.mxu0 0.0
        %849 = vmatprep.subr.mxu0 0.0
        %850 = vmatpush1.msra.mxu0 0.0
        %851 = vmatprep.subr.mxu0 0.0
        %852 = vmatpush1.msra.mxu0 0.0
        %853 = vmatprep.subr.mxu0 0.0
        %854 = vmatpush1.msra.mxu0 0.0
        %855 = vmatprep.subr.mxu0 0.0
        %856 = vmatpush1.msra.mxu0 0.0
        %857 = vmatprep.subr.mxu0 0.0
        %858 = vmatpush1.msra.mxu0 0.0
        %859 = vmatprep.subr.mxu0 0.0
        %860 = vmatpush1.msra.mxu0 0.0
        %861 = vmatprep.subr.mxu0 0.0
        %862 = vmatpush1.msra.mxu0 0.0
        %863 = vmatprep.subr.mxu0 0.0
        %864 = vmatpush1.msra.mxu0 0.0
        %865 = vmatprep.subr.mxu0 0.0
        %866 = vmatpush1.msra.mxu0 0.0
        %867 = vmatprep.subr.mxu0 0.0
        %868 = vmatpush1.msra.mxu0 0.0
        %869 = vmatprep.subr.mxu0 %v400
        %870 = vmatpush1.msra.mxu0 %v399
        %871 = vmatprep.subr.mxu0 %v396
        %872 = vmatpush1.msra.mxu0 %v395
        %873 = vmatprep.subr.mxu0 %v392
        %874 = vmatpush1.msra.mxu0 %v391
        %875 = vmatprep.subr.mxu0 0.0
        %876 = vmatpush2.msra.mxu0 0.0
        %877 = vmatprep.subr.mxu0 0.0
        %878 = vmatpush2.msra.mxu0 0.0
        %879 = vmatprep.subr.mxu0 0.0
        %880 = vmatpush2.msra.mxu0 0.0
        %881 = vmatprep.subr.mxu0 0.0
        %882 = vmatpush2.msra.mxu0 0.0
        %883 = vmatprep.subr.mxu0 0.0
        %884 = vmatpush2.msra.mxu0 0.0
        %885 = vmatprep.subr.mxu0 0.0
        %886 = vmatpush2.msra.mxu0 0.0
        %887 = vmatprep.subr.mxu0 0.0
        %888 = vmatpush2.msra.mxu0 0.0
        %889 = vmatprep.subr.mxu0 0.0
        %890 = vmatpush2.msra.mxu0 0.0
        %891 = vmatprep.subr.mxu0 0.0
        %892 = vmatpush2.msra.mxu0 0.0
        %893 = vmatprep.subr.mxu0 0.0
        %894 = vmatpush2.msra.mxu0 0.0
        %895 = vmatprep.subr.mxu0 0.0
        %896 = vmatpush2.msra.mxu0 0.0
        %897 = vmatprep.subr.mxu0 0.0
        %898 = vmatpush2.msra.mxu0 0.0
        %899 = vmatprep.subr.mxu0 0.0
        %900 = vmatpush2.msra.mxu0 0.0
        %901 = vmatprep.subr.mxu0 0.0
        %902 = vmatpush2.msra.mxu0 0.0
        %903 = vmatprep.subr.mxu0 0.0
        %904 = vmatpush2.msra.mxu0 0.0
        %905 = vmatprep.subr.mxu0 0.0
        %906 = vmatpush2.msra.mxu0 0.0
        %907 = vmatprep.mubr.f32.mxu0 0.0
        %908 = vmatmul.mubr.f32.gmra.mxu0 %v796
        %v909 = vpop.f32.mrf.mxu0
        %v910 = vadd.f32 %v539, %v909
        %v911 = vpop.f32.mrf.mxu0
        %v912 = vadd.f32 %v541, %v911
        %913 = vmatprep.mubr.f32.mxu0 0.0
        %914 = vmatmul.mubr.f32.gmra.mxu0 %v799
        %v915 = vpop.f32.mrf.mxu0
        %v916 = vadd.f32 %v545, %v915
        %v917 = vpop.f32.mrf.mxu0
        %v918 = vadd.f32 %v547, %v917
        %919 = vmatprep.mubr.f32.mxu0 0.0
        %920 = vmatmul.mubr.f32.gmra.mxu0 %v802
        %v921 = vpop.f32.mrf.mxu0
        %v922 = vadd.f32 %v551, %v921
        %v923 = vpop.f32.mrf.mxu0
        %v924 = vadd.f32 %v553, %v923
        %925 = vmatprep.mubr.f32.mxu0 0.0
        %926 = vmatmul.mubr.f32.gmra.mxu0 %v805
        %v927 = vpop.f32.mrf.mxu0
        %v928 = vadd.f32 %v557, %v927
        %v929 = vpop.f32.mrf.mxu0
        %v930 = vadd.f32 %v559, %v929
        %931 = vmatprep.mubr.f32.mxu0 0.0
        %932 = vmatmul.mubr.f32.gmra.mxu0 %v808
        %v933 = vpop.f32.mrf.mxu0
        %v934 = vadd.f32 %v563, %v933
        %v935 = vpop.f32.mrf.mxu0
        %v936 = vadd.f32 %v565, %v935
        %937 = vmatprep.mubr.f32.mxu0 0.0
        %938 = vmatmul.mubr.f32.gmra.mxu0 %v811
        %v939 = vpop.f32.mrf.mxu0
        %v940 = vadd.f32 %v569, %v939
        %v941 = vpop.f32.mrf.mxu0
        %v942 = vadd.f32 %v571, %v941
        %943 = vmatprep.mubr.f32.mxu0 0.0
        %944 = vmatmul.mubr.f32.gmra.mxu0 %v814
        %v945 = vpop.f32.mrf.mxu0
        %v946 = vadd.f32 %v575, %v945
        %v947 = vpop.f32.mrf.mxu0
        %v948 = vadd.f32 %v577, %v947
        %949 = vmatprep.mubr.f32.mxu0 0.0
        %950 = vmatmul.mubr.f32.gmra.mxu0 %v817
        %v951 = vpop.f32.mrf.mxu0
        %v952 = vadd.f32 %v581, %v951
        %v953 = vpop.f32.mrf.mxu0
        %v954 = vadd.f32 %v583, %v953
        %955 = vmatprep.mubr.f32.mxu0 0.0
        %956 = vmatmul.mubr.f32.gmra.mxu0 %v820
        %v957 = vpop.f32.mrf.mxu0
        %v958 = vadd.f32 %v587, %v957
        %v959 = vpop.f32.mrf.mxu0
        %v960 = vadd.f32 %v589, %v959
        %961 = vmatprep.mubr.f32.mxu0 0.0
        %962 = vmatmul.mubr.f32.gmra.mxu0 %v823
        %v963 = vpop.f32.mrf.mxu0
        %v964 = vadd.f32 %v593, %v963
        %v965 = vpop.f32.mrf.mxu0
        %v966 = vadd.f32 %v595, %v965
        %967 = vmatprep.mubr.f32.mxu0 0.0
        %968 = vmatmul.mubr.f32.gmra.mxu0 %v826
        %v969 = vpop.f32.mrf.mxu0
        %v970 = vadd.f32 %v599, %v969
        %v971 = vpop.f32.mrf.mxu0
        %v972 = vadd.f32 %v601, %v971
        %973 = vmatprep.mubr.f32.mxu0 0.0
        %974 = vmatmul.mubr.f32.gmra.mxu0 %v829
        %v975 = vpop.f32.mrf.mxu0
        %v976 = vadd.f32 %v605, %v975
        %v977 = vpop.f32.mrf.mxu0
        %v978 = vadd.f32 %v607, %v977
        %979 = vmatprep.mubr.f32.mxu0 0.0
        %980 = vmatmul.mubr.f32.gmra.mxu0 %v832
        %v981 = vpop.f32.mrf.mxu0
        %v982 = vadd.f32 %v611, %v981
        %v983 = vpop.f32.mrf.mxu0
        %v984 = vadd.f32 %v613, %v983
        %985 = vmatprep.mubr.f32.mxu0 0.0
        %986 = vmatmul.mubr.f32.gmra.mxu0 %v835
        %v987 = vpop.f32.mrf.mxu0
        %v988 = vadd.f32 %v617, %v987
        %v989 = vpop.f32.mrf.mxu0
        %v990 = vadd.f32 %v619, %v989
        %991 = vmatprep.mubr.f32.mxu0 0.0
        %992 = vmatmul.mubr.f32.gmra.mxu0 %v838
        %v993 = vpop.f32.mrf.mxu0
        %v994 = vadd.f32 %v623, %v993
        %v995 = vpop.f32.mrf.mxu0
        %v996 = vadd.f32 %v625, %v995
        %997 = vmatprep.mubr.f32.mxu0 0.0
        %998 = vmatmul.mubr.f32.gmra.mxu0 %v841
        %v999 = vpop.f32.mrf.mxu0
        %v1000 = vadd.f32 %v629, %v999
        %v1001 = vpop.f32.mrf.mxu0
        %v1002 = vadd.f32 %v631, %v1001
        %1003 = vdwg.mxu0
        %1004 = vmatprep.subr.mxu0 0.0
        %1005 = vmatpush1.msra.mxu0 0.0
        %1006 = vmatprep.subr.mxu0 0.0
        %1007 = vmatpush1.msra.mxu0 0.0
        %1008 = vmatprep.subr.mxu0 0.0
        %1009 = vmatpush1.msra.mxu0 0.0
        %1010 = vmatprep.subr.mxu0 0.0
        %1011 = vmatpush1.msra.mxu0 0.0
        %1012 = vmatprep.subr.mxu0 0.0
        %1013 = vmatpush1.msra.mxu0 0.0
        %1014 = vmatprep.subr.mxu0 0.0
        %1015 = vmatpush1.msra.mxu0 0.0
        %1016 = vmatprep.subr.mxu0 0.0
        %1017 = vmatpush1.msra.mxu0 0.0
        %1018 = vmatprep.subr.mxu0 0.0
        %1019 = vmatpush1.msra.mxu0 0.0
        %1020 = vmatprep.subr.mxu0 0.0
        %1021 = vmatpush1.msra.mxu0 0.0
        %1022 = vmatprep.subr.mxu0 0.0
        %1023 = vmatpush1.msra.mxu0 0.0
        %1024 = vmatprep.subr.mxu0 0.0
        %1025 = vmatpush1.msra.mxu0 0.0
        %1026 = vmatprep.subr.mxu0 0.0
        %1027 = vmatpush1.msra.mxu0 0.0
        %1028 = vmatprep.subr.mxu0 0.0
        %1029 = vmatpush1.msra.mxu0 0.0
        %1030 = vmatprep.subr.mxu0 %v402
        %1031 = vmatpush1.msra.mxu0 %v401
        %1032 = vmatprep.subr.mxu0 %v398
        %1033 = vmatpush1.msra.mxu0 %v397
        %1034 = vmatprep.subr.mxu0 %v394
        %1035 = vmatpush1.msra.mxu0 %v393
        %1036 = vmatprep.subr.mxu0 0.0
        %1037 = vmatpush2.msra.mxu0 0.0
        %1038 = vmatprep.subr.mxu0 0.0
        %1039 = vmatpush2.msra.mxu0 0.0
        %1040 = vmatprep.subr.mxu0 0.0
        %1041 = vmatpush2.msra.mxu0 0.0
        %1042 = vmatprep.subr.mxu0 0.0
        %1043 = vmatpush2.msra.mxu0 0.0
        %1044 = vmatprep.subr.mxu0 0.0
        %1045 = vmatpush2.msra.mxu0 0.0
        %1046 = vmatprep.subr.mxu0 0.0
        %1047 = vmatpush2.msra.mxu0 0.0
        %1048 = vmatprep.subr.mxu0 0.0
        %1049 = vmatpush2.msra.mxu0 0.0
        %1050 = vmatprep.subr.mxu0 0.0
        %1051 = vmatpush2.msra.mxu0 0.0
        %1052 = vmatprep.subr.mxu0 0.0
        %1053 = vmatpush2.msra.mxu0 0.0
        %1054 = vmatprep.subr.mxu0 0.0
        %1055 = vmatpush2.msra.mxu0 0.0
        %1056 = vmatprep.subr.mxu0 0.0
        %1057 = vmatpush2.msra.mxu0 0.0
        %1058 = vmatprep.subr.mxu0 0.0
        %1059 = vmatpush2.msra.mxu0 0.0
        %1060 = vmatprep.subr.mxu0 0.0
        %1061 = vmatpush2.msra.mxu0 0.0
        %1062 = vmatprep.subr.mxu0 0.0
        %1063 = vmatpush2.msra.mxu0 0.0
        %1064 = vmatprep.subr.mxu0 0.0
        %1065 = vmatpush2.msra.mxu0 0.0
        %1066 = vmatprep.subr.mxu0 0.0
        %1067 = vmatpush2.msra.mxu0 0.0
        %1068 = vmatprep.mubr.f32.mxu0 0.0
        %1069 = vmatmul.mubr.f32.gmra.mxu0 %v796
        %v1070 = vpop.f32.mrf.mxu0
        %v1071 = vadd.f32 %v700, %v1070
        %v1072 = vpop.f32.mrf.mxu0
        %v1073 = vadd.f32 %v702, %v1072
        %1074 = vmatprep.mubr.f32.mxu0 0.0
        %1075 = vmatmul.mubr.f32.gmra.mxu0 %v799
        %v1076 = vpop.f32.mrf.mxu0
        %v1077 = vadd.f32 %v706, %v1076
        %v1078 = vpop.f32.mrf.mxu0
        %v1079 = vadd.f32 %v708, %v1078
        %1080 = vmatprep.mubr.f32.mxu0 0.0
        %1081 = vmatmul.mubr.f32.gmra.mxu0 %v802
        %v1082 = vpop.f32.mrf.mxu0
        %v1083 = vadd.f32 %v712, %v1082
        %v1084 = vpop.f32.mrf.mxu0
        %v1085 = vadd.f32 %v714, %v1084
        %1086 = vmatprep.mubr.f32.mxu0 0.0
        %1087 = vmatmul.mubr.f32.gmra.mxu0 %v805
        %v1088 = vpop.f32.mrf.mxu0
        %v1089 = vadd.f32 %v718, %v1088
        %v1090 = vpop.f32.mrf.mxu0
        %v1091 = vadd.f32 %v720, %v1090
        %1092 = vmatprep.mubr.f32.mxu0 0.0
        %1093 = vmatmul.mubr.f32.gmra.mxu0 %v808
        %v1094 = vpop.f32.mrf.mxu0
        %v1095 = vadd.f32 %v724, %v1094
        %v1096 = vpop.f32.mrf.mxu0
        %v1097 = vadd.f32 %v726, %v1096
        %1098 = vmatprep.mubr.f32.mxu0 0.0
        %1099 = vmatmul.mubr.f32.gmra.mxu0 %v811
        %v1100 = vpop.f32.mrf.mxu0
        %v1101 = vadd.f32 %v730, %v1100
        %v1102 = vpop.f32.mrf.mxu0
        %v1103 = vadd.f32 %v732, %v1102
        %1104 = vmatprep.mubr.f32.mxu0 0.0
        %1105 = vmatmul.mubr.f32.gmra.mxu0 %v814
        %v1106 = vpop.f32.mrf.mxu0
        %v1107 = vadd.f32 %v736, %v1106
        %v1108 = vpop.f32.mrf.mxu0
        %v1109 = vadd.f32 %v738, %v1108
        %1110 = vmatprep.mubr.f32.mxu0 0.0
        %1111 = vmatmul.mubr.f32.gmra.mxu0 %v817
        %v1112 = vpop.f32.mrf.mxu0
        %v1113 = vadd.f32 %v742, %v1112
        %v1114 = vpop.f32.mrf.mxu0
        %v1115 = vadd.f32 %v744, %v1114
        %1116 = vmatprep.mubr.f32.mxu0 0.0
        %1117 = vmatmul.mubr.f32.gmra.mxu0 %v820
        %v1118 = vpop.f32.mrf.mxu0
        %v1119 = vadd.f32 %v748, %v1118
        %v1120 = vpop.f32.mrf.mxu0
        %v1121 = vadd.f32 %v750, %v1120
        %1122 = vmatprep.mubr.f32.mxu0 0.0
        %1123 = vmatmul.mubr.f32.gmra.mxu0 %v823
        %v1124 = vpop.f32.mrf.mxu0
        %v1125 = vadd.f32 %v754, %v1124
        %v1126 = vpop.f32.mrf.mxu0
        %v1127 = vadd.f32 %v756, %v1126
        %1128 = vmatprep.mubr.f32.mxu0 0.0
        %1129 = vmatmul.mubr.f32.gmra.mxu0 %v826
        %v1130 = vpop.f32.mrf.mxu0
        %v1131 = vadd.f32 %v760, %v1130
        %v1132 = vpop.f32.mrf.mxu0
        %v1133 = vadd.f32 %v762, %v1132
        %1134 = vmatprep.mubr.f32.mxu0 0.0
        %1135 = vmatmul.mubr.f32.gmra.mxu0 %v829
        %v1136 = vpop.f32.mrf.mxu0
        %v1137 = vadd.f32 %v766, %v1136
        %v1138 = vpop.f32.mrf.mxu0
        %v1139 = vadd.f32 %v768, %v1138
        %1140 = vmatprep.mubr.f32.mxu0 0.0
        %1141 = vmatmul.mubr.f32.gmra.mxu0 %v832
        %v1142 = vpop.f32.mrf.mxu0
        %v1143 = vadd.f32 %v772, %v1142
        %v1144 = vpop.f32.mrf.mxu0
        %v1145 = vadd.f32 %v774, %v1144
        %1146 = vmatprep.mubr.f32.mxu0 0.0
        %1147 = vmatmul.mubr.f32.gmra.mxu0 %v835
        %v1148 = vpop.f32.mrf.mxu0
        %v1149 = vadd.f32 %v778, %v1148
        %v1150 = vpop.f32.mrf.mxu0
        %v1151 = vadd.f32 %v780, %v1150
        %1152 = vmatprep.mubr.f32.mxu0 0.0
        %1153 = vmatmul.mubr.f32.gmra.mxu0 %v838
        %v1154 = vpop.f32.mrf.mxu0
        %v1155 = vadd.f32 %v784, %v1154
        %v1156 = vpop.f32.mrf.mxu0
        %v1157 = vadd.f32 %v786, %v1156
        %1158 = vmatprep.mubr.f32.mxu0 0.0
        %1159 = vmatmul.mubr.f32.gmra.mxu0 %v841
        %v1160 = vpop.f32.mrf.mxu0
        %v1161 = vadd.f32 %v790, %v1160
        %v1162 = vpop.f32.mrf.mxu0
        %v1163 = vadd.f32 %v792, %v1162
        %1164 = vdwg.mxu0
        %v1165 = vld [vmem:[%s4] sm:$0xf]
        %v1167 = vlaneseq
        %v1168 = vshrl.u32 %v1167, 7
        %v1169 = vsub.s32 0, %v1168
        %v1170 = vrot.slane %v1165, %v1169
        %v1171 = vlaneseq
        %v1172 = vshrl.u32 %v1171, 7
        %v1173 = vsub.s32 1, %v1172
        %v1174 = vrot.slane %v1165, %v1173
        %v1175 = vlaneseq
        %v1176 = vshrl.u32 %v1175, 7
        %v1177 = vsub.s32 2, %v1176
        %v1178 = vrot.slane %v1165, %v1177
        %v1179 = vlaneseq
        %v1180 = vshrl.u32 %v1179, 7
        %v1181 = vsub.s32 3, %v1180
        %v1182 = vrot.slane %v1165, %v1181
        %v1187 = vadd.f32 %v910, %v1170
        %v1188 = vadd.f32 %v912, %v1174
        %v1189 = vadd.f32 %v1071, %v1178
        %v1190 = vadd.f32 %v1073, %v1182
        %v1191 = vadd.f32 %v916, %v1170
        %v1192 = vadd.f32 %v918, %v1174
        %v1193 = vadd.f32 %v1077, %v1178
        %v1194 = vadd.f32 %v1079, %v1182
        %v1195 = vadd.f32 %v922, %v1170
        %v1196 = vadd.f32 %v924, %v1174
        %v1197 = vadd.f32 %v1083, %v1178
        %v1198 = vadd.f32 %v1085, %v1182
        %v1199 = vadd.f32 %v928, %v1170
        %v1200 = vadd.f32 %v930, %v1174
        %v1201 = vadd.f32 %v1089, %v1178
        %v1202 = vadd.f32 %v1091, %v1182
        %v1203 = vadd.f32 %v934, %v1170
        %v1204 = vadd.f32 %v936, %v1174
        %v1205 = vadd.f32 %v1095, %v1178
        %v1206 = vadd.f32 %v1097, %v1182
        %v1207 = vadd.f32 %v940, %v1170
        %v1208 = vadd.f32 %v942, %v1174
        %v1209 = vadd.f32 %v1101, %v1178
        %v1210 = vadd.f32 %v1103, %v1182
        %v1211 = vadd.f32 %v946, %v1170
        %v1212 = vadd.f32 %v948, %v1174
        %v1213 = vadd.f32 %v1107, %v1178
        %v1214 = vadd.f32 %v1109, %v1182
        %v1215 = vadd.f32 %v952, %v1170
        %v1216 = vadd.f32 %v954, %v1174
        %v1217 = vadd.f32 %v1113, %v1178
        %v1218 = vadd.f32 %v1115, %v1182
        %v1219 = vadd.f32 %v958, %v1170
        %v1220 = vadd.f32 %v960, %v1174
        %v1221 = vadd.f32 %v1119, %v1178
        %v1222 = vadd.f32 %v1121, %v1182
        %v1223 = vadd.f32 %v964, %v1170
        %v1224 = vadd.f32 %v966, %v1174
        %v1225 = vadd.f32 %v1125, %v1178
        %v1226 = vadd.f32 %v1127, %v1182
        %v1227 = vadd.f32 %v970, %v1170
        %v1228 = vadd.f32 %v972, %v1174
        %v1229 = vadd.f32 %v1131, %v1178
        %v1230 = vadd.f32 %v1133, %v1182
        %v1231 = vadd.f32 %v976, %v1170
        %v1232 = vadd.f32 %v978, %v1174
        %v1233 = vadd.f32 %v1137, %v1178
        %v1234 = vadd.f32 %v1139, %v1182
        %v1235 = vadd.f32 %v982, %v1170
        %v1236 = vadd.f32 %v984, %v1174
        %v1237 = vadd.f32 %v1143, %v1178
        %v1238 = vadd.f32 %v1145, %v1182
        %v1239 = vadd.f32 %v988, %v1170
        %v1240 = vadd.f32 %v990, %v1174
        %v1241 = vadd.f32 %v1149, %v1178
        %v1242 = vadd.f32 %v1151, %v1182
        %v1243 = vadd.f32 %v994, %v1170
        %v1244 = vadd.f32 %v996, %v1174
        %v1245 = vadd.f32 %v1155, %v1178
        %v1246 = vadd.f32 %v1157, %v1182
        %v1247 = vadd.f32 %v1000, %v1170
        %v1248 = vadd.f32 %v1002, %v1174
        %v1249 = vadd.f32 %v1161, %v1178
        %v1250 = vadd.f32 %v1163, %v1182
        %v1251 = vmax.f32 %v1187, 0.0
        %v1252 = vmax.f32 %v1188, 0.0
        %v1253 = vmax.f32 %v1189, 0.0
        %v1254 = vmax.f32 %v1190, 0.0
        %v1255 = vmax.f32 %v1191, 0.0
        %v1256 = vmax.f32 %v1192, 0.0
        %v1257 = vmax.f32 %v1193, 0.0
        %v1258 = vmax.f32 %v1194, 0.0
        %v1259 = vmax.f32 %v1195, 0.0
        %v1260 = vmax.f32 %v1196, 0.0
        %v1261 = vmax.f32 %v1197, 0.0
        %v1262 = vmax.f32 %v1198, 0.0
        %v1263 = vmax.f32 %v1199, 0.0
        %v1264 = vmax.f32 %v1200, 0.0
        %v1265 = vmax.f32 %v1201, 0.0
        %v1266 = vmax.f32 %v1202, 0.0
        %v1267 = vmax.f32 %v1203, 0.0
        %v1268 = vmax.f32 %v1204, 0.0
        %v1269 = vmax.f32 %v1205, 0.0
        %v1270 = vmax.f32 %v1206, 0.0
        %v1271 = vmax.f32 %v1207, 0.0
        %v1272 = vmax.f32 %v1208, 0.0
        %v1273 = vmax.f32 %v1209, 0.0
        %v1274 = vmax.f32 %v1210, 0.0
        %v1275 = vmax.f32 %v1211, 0.0
        %v1276 = vmax.f32 %v1212, 0.0
        %v1277 = vmax.f32 %v1213, 0.0
        %v1278 = vmax.f32 %v1214, 0.0
        %v1279 = vmax.f32 %v1215, 0.0
        %v1280 = vmax.f32 %v1216, 0.0
        %v1281 = vmax.f32 %v1217, 0.0
        %v1282 = vmax.f32 %v1218, 0.0
        %v1283 = vmax.f32 %v1219, 0.0
        %v1284 = vmax.f32 %v1220, 0.0
        %v1285 = vmax.f32 %v1221, 0.0
        %v1286 = vmax.f32 %v1222, 0.0
        %v1287 = vmax.f32 %v1223, 0.0
        %v1288 = vmax.f32 %v1224, 0.0
        %v1289 = vmax.f32 %v1225, 0.0
        %v1290 = vmax.f32 %v1226, 0.0
        %v1291 = vmax.f32 %v1227, 0.0
        %v1292 = vmax.f32 %v1228, 0.0
        %v1293 = vmax.f32 %v1229, 0.0
        %v1294 = vmax.f32 %v1230, 0.0
        %v1295 = vmax.f32 %v1231, 0.0
        %v1296 = vmax.f32 %v1232, 0.0
        %v1297 = vmax.f32 %v1233, 0.0
        %v1298 = vmax.f32 %v1234, 0.0
        %v1299 = vmax.f32 %v1235, 0.0
        %v1300 = vmax.f32 %v1236, 0.0
        %v1301 = vmax.f32 %v1237, 0.0
        %v1302 = vmax.f32 %v1238, 0.0
        %v1303 = vmax.f32 %v1239, 0.0
        %v1304 = vmax.f32 %v1240, 0.0
        %v1305 = vmax.f32 %v1241, 0.0
        %v1306 = vmax.f32 %v1242, 0.0
        %v1307 = vmax.f32 %v1243, 0.0
        %v1308 = vmax.f32 %v1244, 0.0
        %v1309 = vmax.f32 %v1245, 0.0
        %v1310 = vmax.f32 %v1246, 0.0
        %v1311 = vmax.f32 %v1247, 0.0
        %v1312 = vmax.f32 %v1248, 0.0
        %v1313 = vmax.f32 %v1249, 0.0
        %v1314 = vmax.f32 %v1250, 0.0
        %v1315 = vld [vmem:[#allocation3] sm:$0xff]
        %v1316 = vld [vmem:[#allocation3 + $0x8] sm:$0xff]
        %v1317 = vld [vmem:[#allocation3 + $0x10] sm:$0xff]
        %v1318 = vld [vmem:[#allocation3 + $0x18] sm:$0xff]
        %v1319 = vld [vmem:[#allocation3 + $0x20] sm:$0xff]
        %v1320 = vld [vmem:[#allocation3 + $0x28] sm:$0xff]
        %v1321 = vld [vmem:[#allocation3 + $0x30] sm:$0xff]
        %v1322 = vld [vmem:[#allocation3 + $0x38] sm:$0xff]
        %v1323 = vld [vmem:[#allocation3 + $0x40] sm:$0xff]
        %v1324 = vld [vmem:[#allocation3 + $0x48] sm:$0xff]
        %v1325 = vld [vmem:[#allocation3 + $0x50] sm:$0xff]
        %v1326 = vld [vmem:[#allocation3 + $0x58] sm:$0xff]
        %v1327 = vld [vmem:[#allocation3 + $0x60] sm:$0xff]
        %v1328 = vld [vmem:[#allocation3 + $0x68] sm:$0xff]
        %v1329 = vld [vmem:[#allocation3 + $0x70] sm:$0xff]
        %v1330 = vld [vmem:[#allocation3 + $0x78] sm:$0xff]
        %v1331 = vld [vmem:[#allocation3 + $0x80] sm:$0xff]
        %v1332 = vld [vmem:[#allocation3 + $0x88] sm:$0xff]
        %v1333 = vld [vmem:[#allocation3 + $0x90] sm:$0xff]
        %v1334 = vld [vmem:[#allocation3 + $0x98] sm:$0xff]
        %v1335 = vld [vmem:[#allocation3 + $0xa0] sm:$0xff]
        %v1336 = vld [vmem:[#allocation3 + $0xa8] sm:$0xff]
        %v1337 = vld [vmem:[#allocation3 + $0xb0] sm:$0xff]
        %v1338 = vld [vmem:[#allocation3 + $0xb8] sm:$0xff]
        %v1339 = vld [vmem:[#allocation3 + $0xc0] sm:$0xff]
        %v1340 = vld [vmem:[#allocation3 + $0xc8] sm:$0xff]
        %v1341 = vld [vmem:[#allocation3 + $0xd0] sm:$0xff]
        %v1342 = vld [vmem:[#allocation3 + $0xd8] sm:$0xff]
        %v1343 = vld [vmem:[#allocation3 + $0xe0] sm:$0xff]
        %v1344 = vld [vmem:[#allocation3 + $0xe8] sm:$0xff]
        %v1345 = vld [vmem:[#allocation3 + $0xf0] sm:$0xff]
        %v1346 = vld [vmem:[#allocation3 + $0xf8] sm:$0xff]
        %v1347 = vld [vmem:[#allocation3 + $0x100] sm:$0xff]
        %v1348 = vld [vmem:[#allocation3 + $0x108] sm:$0xff]
        %v1349 = vld [vmem:[#allocation3 + $0x110] sm:$0xff]
        %v1350 = vld [vmem:[#allocation3 + $0x118] sm:$0xff]
        %v1351 = vld [vmem:[#allocation3 + $0x120] sm:$0xff]
        %v1352 = vld [vmem:[#allocation3 + $0x128] sm:$0xff]
        %v1353 = vld [vmem:[#allocation3 + $0x130] sm:$0xff]
        %v1354 = vld [vmem:[#allocation3 + $0x138] sm:$0xff]
        %v1355 = vld [vmem:[#allocation3 + $0x140] sm:$0xff]
        %v1356 = vld [vmem:[#allocation3 + $0x148] sm:$0xff]
        %v1357 = vld [vmem:[#allocation3 + $0x150] sm:$0xff]
        %v1358 = vld [vmem:[#allocation3 + $0x158] sm:$0xff]
        %v1359 = vld [vmem:[#allocation3 + $0x160] sm:$0xff]
        %v1360 = vld [vmem:[#allocation3 + $0x168] sm:$0xff]
        %v1361 = vld [vmem:[#allocation3 + $0x170] sm:$0xff]
        %v1362 = vld [vmem:[#allocation3 + $0x178] sm:$0xff]
        %v1363 = vld [vmem:[#allocation3 + $0x180] sm:$0xff]
        %v1364 = vld [vmem:[#allocation3 + $0x188] sm:$0xff]
        %v1365 = vld [vmem:[#allocation3 + $0x190] sm:$0xff]
        %v1366 = vld [vmem:[#allocation3 + $0x198] sm:$0xff]
        %v1367 = vld [vmem:[#allocation3 + $0x1a0] sm:$0xff]
        %v1368 = vld [vmem:[#allocation3 + $0x1a8] sm:$0xff]
        %v1369 = vld [vmem:[#allocation3 + $0x1b0] sm:$0xff]
        %v1370 = vld [vmem:[#allocation3 + $0x1b8] sm:$0xff]
        %v1371 = vld [vmem:[#allocation3 + $0x1c0] sm:$0xff]
        %v1372 = vld [vmem:[#allocation3 + $0x1c8] sm:$0xff]
        %v1373 = vld [vmem:[#allocation3 + $0x1d0] sm:$0xff]
        %v1374 = vld [vmem:[#allocation3 + $0x1d8] sm:$0xff]
        %v1375 = vld [vmem:[#allocation3 + $0x1e0] sm:$0xff]
        %v1376 = vld [vmem:[#allocation3 + $0x1e8] sm:$0xff]
        %v1377 = vld [vmem:[#allocation3 + $0x1f0] sm:$0xff]
        %v1378 = vld [vmem:[#allocation3 + $0x1f8] sm:$0xff]
        %v1379 = vld [vmem:[#allocation3 + $0x200] sm:$0xff]
        %v1380 = vld [vmem:[#allocation3 + $0x208] sm:$0xff]
        %v1381 = vld [vmem:[#allocation3 + $0x210] sm:$0xff]
        %v1382 = vld [vmem:[#allocation3 + $0x218] sm:$0xff]
        %v1383 = vld [vmem:[#allocation3 + $0x220] sm:$0xff]
        %v1384 = vld [vmem:[#allocation3 + $0x228] sm:$0xff]
        %v1385 = vld [vmem:[#allocation3 + $0x230] sm:$0xff]
        %v1386 = vld [vmem:[#allocation3 + $0x238] sm:$0xff]
        %v1387 = vld [vmem:[#allocation3 + $0x240] sm:$0xff]
        %v1388 = vld [vmem:[#allocation3 + $0x248] sm:$0xff]
        %v1389 = vld [vmem:[#allocation3 + $0x250] sm:$0xff]
        %v1390 = vld [vmem:[#allocation3 + $0x258] sm:$0xff]
        %v1391 = vld [vmem:[#allocation3 + $0x260] sm:$0xff]
        %v1392 = vld [vmem:[#allocation3 + $0x268] sm:$0xff]
        %v1393 = vld [vmem:[#allocation3 + $0x270] sm:$0xff]
        %v1394 = vld [vmem:[#allocation3 + $0x278] sm:$0xff]
        %v1395 = vld [vmem:[#allocation3 + $0x280] sm:$0xff]
        %v1396 = vld [vmem:[#allocation3 + $0x288] sm:$0xff]
        %v1397 = vld [vmem:[#allocation3 + $0x290] sm:$0xff]
        %v1398 = vld [vmem:[#allocation3 + $0x298] sm:$0xff]
        %v1399 = vld [vmem:[#allocation3 + $0x2a0] sm:$0xff]
        %v1400 = vld [vmem:[#allocation3 + $0x2a8] sm:$0xff]
        %v1401 = vld [vmem:[#allocation3 + $0x2b0] sm:$0xff]
        %v1402 = vld [vmem:[#allocation3 + $0x2b8] sm:$0xff]
        %v1403 = vld [vmem:[#allocation3 + $0x2c0] sm:$0xff]
        %v1404 = vld [vmem:[#allocation3 + $0x2c8] sm:$0xff]
        %v1405 = vld [vmem:[#allocation3 + $0x2d0] sm:$0xff]
        %v1406 = vld [vmem:[#allocation3 + $0x2d8] sm:$0xff]
        %v1407 = vld [vmem:[#allocation3 + $0x2e0] sm:$0xff]
        %v1408 = vld [vmem:[#allocation3 + $0x2e8] sm:$0xff]
        %v1409 = vld [vmem:[#allocation3 + $0x2f0] sm:$0xff]
        %v1410 = vld [vmem:[#allocation3 + $0x2f8] sm:$0xff]
        %v1411 = vld [vmem:[#allocation3 + $0x300] sm:$0xff]
        %v1412 = vld [vmem:[#allocation3 + $0x308] sm:$0xff]
        %v1413 = vld [vmem:[#allocation3 + $0x310] sm:$0xff]
        %v1414 = vld [vmem:[#allocation3 + $0x318] sm:$0xff]
        %v1415 = vld [vmem:[#allocation3 + $0x320] sm:$0xff]
        %v1416 = vld [vmem:[#allocation3 + $0x328] sm:$0xff]
        %v1417 = vld [vmem:[#allocation3 + $0x330] sm:$0xff]
        %v1418 = vld [vmem:[#allocation3 + $0x338] sm:$0xff]
        %v1419 = vld [vmem:[#allocation3 + $0x340] sm:$0xff]
        %v1420 = vld [vmem:[#allocation3 + $0x348] sm:$0xff]
        %v1421 = vld [vmem:[#allocation3 + $0x350] sm:$0xff]
        %v1422 = vld [vmem:[#allocation3 + $0x358] sm:$0xff]
        %v1423 = vld [vmem:[#allocation3 + $0x360] sm:$0xff]
        %v1424 = vld [vmem:[#allocation3 + $0x368] sm:$0xff]
        %v1425 = vld [vmem:[#allocation3 + $0x370] sm:$0xff]
        %v1426 = vld [vmem:[#allocation3 + $0x378] sm:$0xff]
        %v1427 = vld [vmem:[#allocation3 + $0x380] sm:$0xff]
        %v1428 = vld [vmem:[#allocation3 + $0x388] sm:$0xff]
        %v1429 = vld [vmem:[#allocation3 + $0x390] sm:$0xff]
        %v1430 = vld [vmem:[#allocation3 + $0x398] sm:$0xff]
        %v1431 = vld [vmem:[#allocation3 + $0x3a0] sm:$0xff]
        %v1432 = vld [vmem:[#allocation3 + $0x3a8] sm:$0xff]
        %v1433 = vld [vmem:[#allocation3 + $0x3b0] sm:$0xff]
        %v1434 = vld [vmem:[#allocation3 + $0x3b8] sm:$0xff]
        %v1435 = vld [vmem:[#allocation3 + $0x3c0] sm:$0xff]
        %v1436 = vld [vmem:[#allocation3 + $0x3c8] sm:$0xff]
        %v1437 = vld [vmem:[#allocation3 + $0x3d0] sm:$0xff]
        %v1438 = vld [vmem:[#allocation3 + $0x3d8] sm:$0xff]
        %v1439 = vld [vmem:[#allocation3 + $0x3e0] sm:$0xff]
        %v1440 = vld [vmem:[#allocation3 + $0x3e8] sm:$0xff]
        %v1441 = vld [vmem:[#allocation3 + $0x3f0] sm:$0xff]
        %v1442 = vld [vmem:[#allocation3 + $0x3f8] sm:$0xff]
        %v1443 = vld [vmem:[#allocation3 + $0x400] sm:$0xff]
        %v1444 = vld [vmem:[#allocation3 + $0x408] sm:$0xff]
        %v1445 = vld [vmem:[#allocation3 + $0x410] sm:$0xff]
        %v1446 = vld [vmem:[#allocation3 + $0x418] sm:$0xff]
        %v1447 = vld [vmem:[#allocation3 + $0x420] sm:$0xff]
        %v1448 = vld [vmem:[#allocation3 + $0x428] sm:$0xff]
        %v1449 = vld [vmem:[#allocation3 + $0x430] sm:$0xff]
        %v1450 = vld [vmem:[#allocation3 + $0x438] sm:$0xff]
        %v1451 = vld [vmem:[#allocation3 + $0x440] sm:$0xff]
        %v1452 = vld [vmem:[#allocation3 + $0x448] sm:$0xff]
        %v1453 = vld [vmem:[#allocation3 + $0x450] sm:$0xff]
        %v1454 = vld [vmem:[#allocation3 + $0x458] sm:$0xff]
        %v1455 = vld [vmem:[#allocation3 + $0x460] sm:$0xff]
        %v1456 = vld [vmem:[#allocation3 + $0x468] sm:$0xff]
        %v1457 = vld [vmem:[#allocation3 + $0x470] sm:$0xff]
        %v1458 = vld [vmem:[#allocation3 + $0x478] sm:$0xff]
        %v1459 = vld [vmem:[#allocation3 + $0x480] sm:$0xff]
        %v1460 = vld [vmem:[#allocation3 + $0x488] sm:$0xff]
        %v1461 = vld [vmem:[#allocation3 + $0x490] sm:$0xff]
        %v1462 = vld [vmem:[#allocation3 + $0x498] sm:$0xff]
        %v1463 = vld [vmem:[#allocation3 + $0x4a0] sm:$0xff]
        %v1464 = vld [vmem:[#allocation3 + $0x4a8] sm:$0xff]
        %v1465 = vld [vmem:[%s6] sm:$0x7]
        %v1467 = vlaneseq
        %v1468 = vshrl.u32 %v1467, 7
        %v1469 = vsub.s32 0, %v1468
        %v1470 = vrot.slane %v1465, %v1469
        %v1471 = vlaneseq
        %v1472 = vshrl.u32 %v1471, 7
        %v1473 = vsub.s32 1, %v1472
        %v1474 = vrot.slane %v1465, %v1473
        %v1475 = vlaneseq
        %v1476 = vshrl.u32 %v1475, 7
        %v1477 = vsub.s32 2, %v1476
        %v1478 = vrot.slane %v1465, %v1477
        %vm1482 = vcmask 130048
        %v1484 = vsel %vm1482, %v1254, 0
        %v1487 = vsel %vm1482, %v1258, 0
        %v1490 = vsel %vm1482, %v1262, 0
        %v1493 = vsel %vm1482, %v1266, 0
        %v1496 = vsel %vm1482, %v1270, 0
        %v1499 = vsel %vm1482, %v1274, 0
        %v1502 = vsel %vm1482, %v1278, 0
        %v1505 = vsel %vm1482, %v1282, 0
        %v1508 = vsel %vm1482, %v1286, 0
        %v1511 = vsel %vm1482, %v1290, 0
        %v1514 = vsel %vm1482, %v1294, 0
        %v1517 = vsel %vm1482, %v1298, 0
        %v1520 = vsel %vm1482, %v1302, 0
        %v1523 = vsel %vm1482, %v1306, 0
        %v1526 = vsel %vm1482, %v1310, 0
        %v1529 = vsel %vm1482, %v1314, 0
        %1531 = vmatprep.subr.mxu0 %v1361
        %1532 = vmatpush1.msra.mxu0 %v1360
        %1533 = vmatprep.subr.mxu0 %v1358
        %1534 = vmatpush1.msra.mxu0 %v1357
        %1535 = vmatprep.subr.mxu0 %v1355
        %1536 = vmatpush1.msra.mxu0 %v1354
        %1537 = vmatprep.subr.mxu0 %v1352
        %1538 = vmatpush1.msra.mxu0 %v1351
        %1539 = vmatprep.subr.mxu0 %v1349
        %1540 = vmatpush1.msra.mxu0 %v1348
        %1541 = vmatprep.subr.mxu0 %v1346
        %1542 = vmatpush1.msra.mxu0 %v1345
        %1543 = vmatprep.subr.mxu0 %v1343
        %1544 = vmatpush1.msra.mxu0 %v1342
        %1545 = vmatprep.subr.mxu0 %v1340
        %1546 = vmatpush1.msra.mxu0 %v1339
        %1547 = vmatprep.subr.mxu0 %v1337
        %1548 = vmatpush1.msra.mxu0 %v1336
        %1549 = vmatprep.subr.mxu0 %v1334
        %1550 = vmatpush1.msra.mxu0 %v1333
        %1551 = vmatprep.subr.mxu0 %v1331
        %1552 = vmatpush1.msra.mxu0 %v1330
        %1553 = vmatprep.subr.mxu0 %v1328
        %1554 = vmatpush1.msra.mxu0 %v1327
        %1555 = vmatprep.subr.mxu0 %v1325
        %1556 = vmatpush1.msra.mxu0 %v1324
        %1557 = vmatprep.subr.mxu0 %v1322
        %1558 = vmatpush1.msra.mxu0 %v1321
        %1559 = vmatprep.subr.mxu0 %v1319
        %1560 = vmatpush1.msra.mxu0 %v1318
        %1561 = vmatprep.subr.mxu0 %v1316
        %1562 = vmatpush1.msra.mxu0 %v1315
        %1563 = vmatprep.subr.mxu0 %v1409
        %1564 = vmatpush2.msra.mxu0 %v1408
        %1565 = vmatprep.subr.mxu0 %v1406
        %1566 = vmatpush2.msra.mxu0 %v1405
        %1567 = vmatprep.subr.mxu0 %v1403
        %1568 = vmatpush2.msra.mxu0 %v1402
        %1569 = vmatprep.subr.mxu0 %v1400
        %1570 = vmatpush2.msra.mxu0 %v1399
        %1571 = vmatprep.subr.mxu0 %v1397
        %1572 = vmatpush2.msra.mxu0 %v1396
        %1573 = vmatprep.subr.mxu0 %v1394
        %1574 = vmatpush2.msra.mxu0 %v1393
        %1575 = vmatprep.subr.mxu0 %v1391
        %1576 = vmatpush2.msra.mxu0 %v1390
        %1577 = vmatprep.subr.mxu0 %v1388
        %1578 = vmatpush2.msra.mxu0 %v1387
        %1579 = vmatprep.subr.mxu0 %v1385
        %1580 = vmatpush2.msra.mxu0 %v1384
        %1581 = vmatprep.subr.mxu0 %v1382
        %1582 = vmatpush2.msra.mxu0 %v1381
        %1583 = vmatprep.subr.mxu0 %v1379
        %1584 = vmatpush2.msra.mxu0 %v1378
        %1585 = vmatprep.subr.mxu0 %v1376
        %1586 = vmatpush2.msra.mxu0 %v1375
        %1587 = vmatprep.subr.mxu0 %v1373
        %1588 = vmatpush2.msra.mxu0 %v1372
        %1589 = vmatprep.subr.mxu0 %v1370
        %1590 = vmatpush2.msra.mxu0 %v1369
        %1591 = vmatprep.subr.mxu0 %v1367
        %1592 = vmatpush2.msra.mxu0 %v1366
        %1593 = vmatprep.subr.mxu0 %v1364
        %1594 = vmatpush2.msra.mxu0 %v1363
        %1595 = vmatprep.mubr.f32.mxu0 %v1252
        %1596 = vmatmul.mubr.f32.gmra.mxu0 %v1251
        %v1597 = vpop.f32.mrf.mxu0
        %v1598 = vadd.f32 %v1470, %v1597
        %v1599 = vpop.f32.mrf.mxu0
        %v1600 = vadd.f32 %v1474, %v1599
        %1601 = vmatprep.mubr.f32.mxu0 %v1256
        %1602 = vmatmul.mubr.f32.gmra.mxu0 %v1255
        %v1603 = vpop.f32.mrf.mxu0
        %v1604 = vadd.f32 %v1470, %v1603
        %v1605 = vpop.f32.mrf.mxu0
        %v1606 = vadd.f32 %v1474, %v1605
        %1607 = vmatprep.mubr.f32.mxu0 %v1260
        %1608 = vmatmul.mubr.f32.gmra.mxu0 %v1259
        %v1609 = vpop.f32.mrf.mxu0
        %v1610 = vadd.f32 %v1470, %v1609
        %v1611 = vpop.f32.mrf.mxu0
        %v1612 = vadd.f32 %v1474, %v1611
        %1613 = vmatprep.mubr.f32.mxu0 %v1264
        %1614 = vmatmul.mubr.f32.gmra.mxu0 %v1263
        %v1615 = vpop.f32.mrf.mxu0
        %v1616 = vadd.f32 %v1470, %v1615
        %v1617 = vpop.f32.mrf.mxu0
        %v1618 = vadd.f32 %v1474, %v1617
        %1619 = vmatprep.mubr.f32.mxu0 %v1268
        %1620 = vmatmul.mubr.f32.gmra.mxu0 %v1267
        %v1621 = vpop.f32.mrf.mxu0
        %v1622 = vadd.f32 %v1470, %v1621
        %v1623 = vpop.f32.mrf.mxu0
        %v1624 = vadd.f32 %v1474, %v1623
        %1625 = vmatprep.mubr.f32.mxu0 %v1272
        %1626 = vmatmul.mubr.f32.gmra.mxu0 %v1271
        %v1627 = vpop.f32.mrf.mxu0
        %v1628 = vadd.f32 %v1470, %v1627
        %v1629 = vpop.f32.mrf.mxu0
        %v1630 = vadd.f32 %v1474, %v1629
        %1631 = vmatprep.mubr.f32.mxu0 %v1276
        %1632 = vmatmul.mubr.f32.gmra.mxu0 %v1275
        %v1633 = vpop.f32.mrf.mxu0
        %v1634 = vadd.f32 %v1470, %v1633
        %v1635 = vpop.f32.mrf.mxu0
        %v1636 = vadd.f32 %v1474, %v1635
        %1637 = vmatprep.mubr.f32.mxu0 %v1280
        %1638 = vmatmul.mubr.f32.gmra.mxu0 %v1279
        %v1639 = vpop.f32.mrf.mxu0
        %v1640 = vadd.f32 %v1470, %v1639
        %v1641 = vpop.f32.mrf.mxu0
        %v1642 = vadd.f32 %v1474, %v1641
        %1643 = vmatprep.mubr.f32.mxu0 %v1284
        %1644 = vmatmul.mubr.f32.gmra.mxu0 %v1283
        %v1645 = vpop.f32.mrf.mxu0
        %v1646 = vadd.f32 %v1470, %v1645
        %v1647 = vpop.f32.mrf.mxu0
        %v1648 = vadd.f32 %v1474, %v1647
        %1649 = vmatprep.mubr.f32.mxu0 %v1288
        %1650 = vmatmul.mubr.f32.gmra.mxu0 %v1287
        %v1651 = vpop.f32.mrf.mxu0
        %v1652 = vadd.f32 %v1470, %v1651
        %v1653 = vpop.f32.mrf.mxu0
        %v1654 = vadd.f32 %v1474, %v1653
        %1655 = vmatprep.mubr.f32.mxu0 %v1292
        %1656 = vmatmul.mubr.f32.gmra.mxu0 %v1291
        %v1657 = vpop.f32.mrf.mxu0
        %v1658 = vadd.f32 %v1470, %v1657
        %v1659 = vpop.f32.mrf.mxu0
        %v1660 = vadd.f32 %v1474, %v1659
        %1661 = vmatprep.mubr.f32.mxu0 %v1296
        %1662 = vmatmul.mubr.f32.gmra.mxu0 %v1295
        %v1663 = vpop.f32.mrf.mxu0
        %v1664 = vadd.f32 %v1470, %v1663
        %v1665 = vpop.f32.mrf.mxu0
        %v1666 = vadd.f32 %v1474, %v1665
        %1667 = vmatprep.mubr.f32.mxu0 %v1300
        %1668 = vmatmul.mubr.f32.gmra.mxu0 %v1299
        %v1669 = vpop.f32.mrf.mxu0
        %v1670 = vadd.f32 %v1470, %v1669
        %v1671 = vpop.f32.mrf.mxu0
        %v1672 = vadd.f32 %v1474, %v1671
        %1673 = vmatprep.mubr.f32.mxu0 %v1304
        %1674 = vmatmul.mubr.f32.gmra.mxu0 %v1303
        %v1675 = vpop.f32.mrf.mxu0
        %v1676 = vadd.f32 %v1470, %v1675
        %v1677 = vpop.f32.mrf.mxu0
        %v1678 = vadd.f32 %v1474, %v1677
        %1679 = vmatprep.mubr.f32.mxu0 %v1308
        %1680 = vmatmul.mubr.f32.gmra.mxu0 %v1307
        %v1681 = vpop.f32.mrf.mxu0
        %v1682 = vadd.f32 %v1470, %v1681
        %v1683 = vpop.f32.mrf.mxu0
        %v1684 = vadd.f32 %v1474, %v1683
        %1685 = vmatprep.mubr.f32.mxu0 %v1312
        %1686 = vmatmul.mubr.f32.gmra.mxu0 %v1311
        %v1687 = vpop.f32.mrf.mxu0
        %v1688 = vadd.f32 %v1470, %v1687
        %v1689 = vpop.f32.mrf.mxu0
        %v1690 = vadd.f32 %v1474, %v1689
        %1691 = vdwg.mxu0
        %1692 = vmatprep.subr.mxu0 %v1457
        %1693 = vmatpush1.msra.mxu0 %v1456
        %1694 = vmatprep.subr.mxu0 %v1454
        %1695 = vmatpush1.msra.mxu0 %v1453
        %1696 = vmatprep.subr.mxu0 %v1451
        %1697 = vmatpush1.msra.mxu0 %v1450
        %1698 = vmatprep.subr.mxu0 %v1448
        %1699 = vmatpush1.msra.mxu0 %v1447
        %1700 = vmatprep.subr.mxu0 %v1445
        %1701 = vmatpush1.msra.mxu0 %v1444
        %1702 = vmatprep.subr.mxu0 %v1442
        %1703 = vmatpush1.msra.mxu0 %v1441
        %1704 = vmatprep.subr.mxu0 %v1439
        %1705 = vmatpush1.msra.mxu0 %v1438
        %1706 = vmatprep.subr.mxu0 %v1436
        %1707 = vmatpush1.msra.mxu0 %v1435
        %1708 = vmatprep.subr.mxu0 %v1433
        %1709 = vmatpush1.msra.mxu0 %v1432
        %1710 = vmatprep.subr.mxu0 %v1430
        %1711 = vmatpush1.msra.mxu0 %v1429
        %1712 = vmatprep.subr.mxu0 %v1427
        %1713 = vmatpush1.msra.mxu0 %v1426
        %1714 = vmatprep.subr.mxu0 %v1424
        %1715 = vmatpush1.msra.mxu0 %v1423
        %1716 = vmatprep.subr.mxu0 %v1421
        %1717 = vmatpush1.msra.mxu0 %v1420
        %1718 = vmatprep.subr.mxu0 %v1418
        %1719 = vmatpush1.msra.mxu0 %v1417
        %1720 = vmatprep.subr.mxu0 %v1415
        %1721 = vmatpush1.msra.mxu0 %v1414
        %1722 = vmatprep.subr.mxu0 %v1412
        %1723 = vmatpush1.msra.mxu0 %v1411
        %1724 = vmatprep.subr.mxu0 0.0
        %1725 = vmatpush2.msra.mxu0 0.0
        %1726 = vmatprep.subr.mxu0 0.0
        %1727 = vmatpush2.msra.mxu0 0.0
        %1728 = vmatprep.subr.mxu0 0.0
        %1729 = vmatpush2.msra.mxu0 0.0
        %1730 = vmatprep.subr.mxu0 0.0
        %1731 = vmatpush2.msra.mxu0 0.0
        %1732 = vmatprep.subr.mxu0 0.0
        %1733 = vmatpush2.msra.mxu0 0.0
        %1734 = vmatprep.subr.mxu0 0.0
        %1735 = vmatpush2.msra.mxu0 0.0
        %1736 = vmatprep.subr.mxu0 0.0
        %1737 = vmatpush2.msra.mxu0 0.0
        %1738 = vmatprep.subr.mxu0 0.0
        %1739 = vmatpush2.msra.mxu0 0.0
        %1740 = vmatprep.subr.mxu0 0.0
        %1741 = vmatpush2.msra.mxu0 0.0
        %1742 = vmatprep.subr.mxu0 0.0
        %1743 = vmatpush2.msra.mxu0 0.0
        %1744 = vmatprep.subr.mxu0 0.0
        %1745 = vmatpush2.msra.mxu0 0.0
        %1746 = vmatprep.subr.mxu0 0.0
        %1747 = vmatpush2.msra.mxu0 0.0
        %1748 = vmatprep.subr.mxu0 0.0
        %1749 = vmatpush2.msra.mxu0 0.0
        %1750 = vmatprep.subr.mxu0 0.0
        %1751 = vmatpush2.msra.mxu0 0.0
        %1752 = vmatprep.subr.mxu0 %v1463
        %1753 = vmatpush2.msra.mxu0 %v1462
        %1754 = vmatprep.subr.mxu0 %v1460
        %1755 = vmatpush2.msra.mxu0 %v1459
        %1756 = vmatprep.mubr.f32.mxu0 %v1484
        %1757 = vmatmul.mubr.f32.gmra.mxu0 %v1253
        %v1758 = vpop.f32.mrf.mxu0
        %v1759 = vadd.f32 %v1598, %v1758
        %v1760 = vpop.f32.mrf.mxu0
        %v1761 = vadd.f32 %v1600, %v1760
        %1762 = vmatprep.mubr.f32.mxu0 %v1487
        %1763 = vmatmul.mubr.f32.gmra.mxu0 %v1257
        %v1764 = vpop.f32.mrf.mxu0
        %v1765 = vadd.f32 %v1604, %v1764
        %v1766 = vpop.f32.mrf.mxu0
        %v1767 = vadd.f32 %v1606, %v1766
        %1768 = vmatprep.mubr.f32.mxu0 %v1490
        %1769 = vmatmul.mubr.f32.gmra.mxu0 %v1261
        %v1770 = vpop.f32.mrf.mxu0
        %v1771 = vadd.f32 %v1610, %v1770
        %v1772 = vpop.f32.mrf.mxu0
        %v1773 = vadd.f32 %v1612, %v1772
        %1774 = vmatprep.mubr.f32.mxu0 %v1493
        %1775 = vmatmul.mubr.f32.gmra.mxu0 %v1265
        %v1776 = vpop.f32.mrf.mxu0
        %v1777 = vadd.f32 %v1616, %v1776
        %v1778 = vpop.f32.mrf.mxu0
        %v1779 = vadd.f32 %v1618, %v1778
        %1780 = vmatprep.mubr.f32.mxu0 %v1496
        %1781 = vmatmul.mubr.f32.gmra.mxu0 %v1269
        %v1782 = vpop.f32.mrf.mxu0
        %v1783 = vadd.f32 %v1622, %v1782
        %v1784 = vpop.f32.mrf.mxu0
        %v1785 = vadd.f32 %v1624, %v1784
        %1786 = vmatprep.mubr.f32.mxu0 %v1499
        %1787 = vmatmul.mubr.f32.gmra.mxu0 %v1273
        %v1788 = vpop.f32.mrf.mxu0
        %v1789 = vadd.f32 %v1628, %v1788
        %v1790 = vpop.f32.mrf.mxu0
        %v1791 = vadd.f32 %v1630, %v1790
        %1792 = vmatprep.mubr.f32.mxu0 %v1502
        %1793 = vmatmul.mubr.f32.gmra.mxu0 %v1277
        %v1794 = vpop.f32.mrf.mxu0
        %v1795 = vadd.f32 %v1634, %v1794
        %v1796 = vpop.f32.mrf.mxu0
        %v1797 = vadd.f32 %v1636, %v1796
        %1798 = vmatprep.mubr.f32.mxu0 %v1505
        %1799 = vmatmul.mubr.f32.gmra.mxu0 %v1281
        %v1800 = vpop.f32.mrf.mxu0
        %v1801 = vadd.f32 %v1640, %v1800
        %v1802 = vpop.f32.mrf.mxu0
        %v1803 = vadd.f32 %v1642, %v1802
        %1804 = vmatprep.mubr.f32.mxu0 %v1508
        %1805 = vmatmul.mubr.f32.gmra.mxu0 %v1285
        %v1806 = vpop.f32.mrf.mxu0
        %v1807 = vadd.f32 %v1646, %v1806
        %v1808 = vpop.f32.mrf.mxu0
        %v1809 = vadd.f32 %v1648, %v1808
        %1810 = vmatprep.mubr.f32.mxu0 %v1511
        %1811 = vmatmul.mubr.f32.gmra.mxu0 %v1289
        %v1812 = vpop.f32.mrf.mxu0
        %v1813 = vadd.f32 %v1652, %v1812
        %v1814 = vpop.f32.mrf.mxu0
        %v1815 = vadd.f32 %v1654, %v1814
        %1816 = vmatprep.mubr.f32.mxu0 %v1514
        %1817 = vmatmul.mubr.f32.gmra.mxu0 %v1293
        %v1818 = vpop.f32.mrf.mxu0
        %v1819 = vadd.f32 %v1658, %v1818
        %v1820 = vpop.f32.mrf.mxu0
        %v1821 = vadd.f32 %v1660, %v1820
        %1822 = vmatprep.mubr.f32.mxu0 %v1517
        %1823 = vmatmul.mubr.f32.gmra.mxu0 %v1297
        %v1824 = vpop.f32.mrf.mxu0
        %v1825 = vadd.f32 %v1664, %v1824
        %v1826 = vpop.f32.mrf.mxu0
        %v1827 = vadd.f32 %v1666, %v1826
        %1828 = vmatprep.mubr.f32.mxu0 %v1520
        %1829 = vmatmul.mubr.f32.gmra.mxu0 %v1301
        %v1830 = vpop.f32.mrf.mxu0
        %v1831 = vadd.f32 %v1670, %v1830
        %v1832 = vpop.f32.mrf.mxu0
        %v1833 = vadd.f32 %v1672, %v1832
        %1834 = vmatprep.mubr.f32.mxu0 %v1523
        %1835 = vmatmul.mubr.f32.gmra.mxu0 %v1305
        %v1836 = vpop.f32.mrf.mxu0
        %v1837 = vadd.f32 %v1676, %v1836
        %v1838 = vpop.f32.mrf.mxu0
        %v1839 = vadd.f32 %v1678, %v1838
        %1840 = vmatprep.mubr.f32.mxu0 %v1526
        %1841 = vmatmul.mubr.f32.gmra.mxu0 %v1309
        %v1842 = vpop.f32.mrf.mxu0
        %v1843 = vadd.f32 %v1682, %v1842
        %v1844 = vpop.f32.mrf.mxu0
        %v1845 = vadd.f32 %v1684, %v1844
        %1846 = vmatprep.mubr.f32.mxu0 %v1529
        %1847 = vmatmul.mubr.f32.gmra.mxu0 %v1313
        %v1848 = vpop.f32.mrf.mxu0
        %v1849 = vadd.f32 %v1688, %v1848
        %v1850 = vpop.f32.mrf.mxu0
        %v1851 = vadd.f32 %v1690, %v1850
        %1852 = vdwg.mxu0
        %1853 = vmatprep.subr.mxu0 0.0
        %1854 = vmatpush1.msra.mxu0 %v1362
        %1855 = vmatprep.subr.mxu0 0.0
        %1856 = vmatpush1.msra.mxu0 %v1359
        %1857 = vmatprep.subr.mxu0 0.0
        %1858 = vmatpush1.msra.mxu0 %v1356
        %1859 = vmatprep.subr.mxu0 0.0
        %1860 = vmatpush1.msra.mxu0 %v1353
        %1861 = vmatprep.subr.mxu0 0.0
        %1862 = vmatpush1.msra.mxu0 %v1350
        %1863 = vmatprep.subr.mxu0 0.0
        %1864 = vmatpush1.msra.mxu0 %v1347
        %1865 = vmatprep.subr.mxu0 0.0
        %1866 = vmatpush1.msra.mxu0 %v1344
        %1867 = vmatprep.subr.mxu0 0.0
        %1868 = vmatpush1.msra.mxu0 %v1341
        %1869 = vmatprep.subr.mxu0 0.0
        %1870 = vmatpush1.msra.mxu0 %v1338
        %1871 = vmatprep.subr.mxu0 0.0
        %1872 = vmatpush1.msra.mxu0 %v1335
        %1873 = vmatprep.subr.mxu0 0.0
        %1874 = vmatpush1.msra.mxu0 %v1332
        %1875 = vmatprep.subr.mxu0 0.0
        %1876 = vmatpush1.msra.mxu0 %v1329
        %1877 = vmatprep.subr.mxu0 0.0
        %1878 = vmatpush1.msra.mxu0 %v1326
        %1879 = vmatprep.subr.mxu0 0.0
        %1880 = vmatpush1.msra.mxu0 %v1323
        %1881 = vmatprep.subr.mxu0 0.0
        %1882 = vmatpush1.msra.mxu0 %v1320
        %1883 = vmatprep.subr.mxu0 0.0
        %1884 = vmatpush1.msra.mxu0 %v1317
        %1885 = vmatprep.subr.mxu0 0.0
        %1886 = vmatpush2.msra.mxu0 %v1410
        %1887 = vmatprep.subr.mxu0 0.0
        %1888 = vmatpush2.msra.mxu0 %v1407
        %1889 = vmatprep.subr.mxu0 0.0
        %1890 = vmatpush2.msra.mxu0 %v1404
        %1891 = vmatprep.subr.mxu0 0.0
        %1892 = vmatpush2.msra.mxu0 %v1401
        %1893 = vmatprep.subr.mxu0 0.0
        %1894 = vmatpush2.msra.mxu0 %v1398
        %1895 = vmatprep.subr.mxu0 0.0
        %1896 = vmatpush2.msra.mxu0 %v1395
        %1897 = vmatprep.subr.mxu0 0.0
        %1898 = vmatpush2.msra.mxu0 %v1392
        %1899 = vmatprep.subr.mxu0 0.0
        %1900 = vmatpush2.msra.mxu0 %v1389
        %1901 = vmatprep.subr.mxu0 0.0
        %1902 = vmatpush2.msra.mxu0 %v1386
        %1903 = vmatprep.subr.mxu0 0.0
        %1904 = vmatpush2.msra.mxu0 %v1383
        %1905 = vmatprep.subr.mxu0 0.0
        %1906 = vmatpush2.msra.mxu0 %v1380
        %1907 = vmatprep.subr.mxu0 0.0
        %1908 = vmatpush2.msra.mxu0 %v1377
        %1909 = vmatprep.subr.mxu0 0.0
        %1910 = vmatpush2.msra.mxu0 %v1374
        %1911 = vmatprep.subr.mxu0 0.0
        %1912 = vmatpush2.msra.mxu0 %v1371
        %1913 = vmatprep.subr.mxu0 0.0
        %1914 = vmatpush2.msra.mxu0 %v1368
        %1915 = vmatprep.subr.mxu0 0.0
        %1916 = vmatpush2.msra.mxu0 %v1365
        %1917 = vmatprep.mubr.f32.mxu0 %v1252
        %1918 = vmatmul.mubr.f32.gmra.mxu0 %v1251
        %v1919 = vpop.f32.mrf.mxu0
        %v1920 = vadd.f32 %v1478, %v1919
        %v1921 = vpop.f32.mrf.mxu0
        %1922 = vmatprep.mubr.f32.mxu0 %v1256
        %1923 = vmatmul.mubr.f32.gmra.mxu0 %v1255
        %v1924 = vpop.f32.mrf.mxu0
        %v1925 = vadd.f32 %v1478, %v1924
        %v1926 = vpop.f32.mrf.mxu0
        %1927 = vmatprep.mubr.f32.mxu0 %v1260
        %1928 = vmatmul.mubr.f32.gmra.mxu0 %v1259
        %v1929 = vpop.f32.mrf.mxu0
        %v1930 = vadd.f32 %v1478, %v1929
        %v1931 = vpop.f32.mrf.mxu0
        %1932 = vmatprep.mubr.f32.mxu0 %v1264
        %1933 = vmatmul.mubr.f32.gmra.mxu0 %v1263
        %v1934 = vpop.f32.mrf.mxu0
        %v1935 = vadd.f32 %v1478, %v1934
        %v1936 = vpop.f32.mrf.mxu0
        %1937 = vmatprep.mubr.f32.mxu0 %v1268
        %1938 = vmatmul.mubr.f32.gmra.mxu0 %v1267
        %v1939 = vpop.f32.mrf.mxu0
        %v1940 = vadd.f32 %v1478, %v1939
        %v1941 = vpop.f32.mrf.mxu0
        %1942 = vmatprep.mubr.f32.mxu0 %v1272
        %1943 = vmatmul.mubr.f32.gmra.mxu0 %v1271
        %v1944 = vpop.f32.mrf.mxu0
        %v1945 = vadd.f32 %v1478, %v1944
        %v1946 = vpop.f32.mrf.mxu0
        %1947 = vmatprep.mubr.f32.mxu0 %v1276
        %1948 = vmatmul.mubr.f32.gmra.mxu0 %v1275
        %v1949 = vpop.f32.mrf.mxu0
        %v1950 = vadd.f32 %v1478, %v1949
        %v1951 = vpop.f32.mrf.mxu0
        %1952 = vmatprep.mubr.f32.mxu0 %v1280
        %1953 = vmatmul.mubr.f32.gmra.mxu0 %v1279
        %v1954 = vpop.f32.mrf.mxu0
        %v1955 = vadd.f32 %v1478, %v1954
        %v1956 = vpop.f32.mrf.mxu0
        %1957 = vmatprep.mubr.f32.mxu0 %v1284
        %1958 = vmatmul.mubr.f32.gmra.mxu0 %v1283
        %v1959 = vpop.f32.mrf.mxu0
        %v1960 = vadd.f32 %v1478, %v1959
        %v1961 = vpop.f32.mrf.mxu0
        %1962 = vmatprep.mubr.f32.mxu0 %v1288
        %1963 = vmatmul.mubr.f32.gmra.mxu0 %v1287
        %v1964 = vpop.f32.mrf.mxu0
        %v1965 = vadd.f32 %v1478, %v1964
        %v1966 = vpop.f32.mrf.mxu0
        %1967 = vmatprep.mubr.f32.mxu0 %v1292
        %1968 = vmatmul.mubr.f32.gmra.mxu0 %v1291
        %v1969 = vpop.f32.mrf.mxu0
        %v1970 = vadd.f32 %v1478, %v1969
        %v1971 = vpop.f32.mrf.mxu0
        %1972 = vmatprep.mubr.f32.mxu0 %v1296
        %1973 = vmatmul.mubr.f32.gmra.mxu0 %v1295
        %v1974 = vpop.f32.mrf.mxu0
        %v1975 = vadd.f32 %v1478, %v1974
        %v1976 = vpop.f32.mrf.mxu0
        %1977 = vmatprep.mubr.f32.mxu0 %v1300
        %1978 = vmatmul.mubr.f32.gmra.mxu0 %v1299
        %v1979 = vpop.f32.mrf.mxu0
        %v1980 = vadd.f32 %v1478, %v1979
        %v1981 = vpop.f32.mrf.mxu0
        %1982 = vmatprep.mubr.f32.mxu0 %v1304
        %1983 = vmatmul.mubr.f32.gmra.mxu0 %v1303
        %v1984 = vpop.f32.mrf.mxu0
        %v1985 = vadd.f32 %v1478, %v1984
        %v1986 = vpop.f32.mrf.mxu0
        %1987 = vmatprep.mubr.f32.mxu0 %v1308
        %1988 = vmatmul.mubr.f32.gmra.mxu0 %v1307
        %v1989 = vpop.f32.mrf.mxu0
        %v1990 = vadd.f32 %v1478, %v1989
        %v1991 = vpop.f32.mrf.mxu0
        %1992 = vmatprep.mubr.f32.mxu0 %v1312
        %1993 = vmatmul.mubr.f32.gmra.mxu0 %v1311
        %v1994 = vpop.f32.mrf.mxu0
        %v1995 = vadd.f32 %v1478, %v1994
        %v1996 = vpop.f32.mrf.mxu0
        %1997 = vdwg.mxu0
        %1998 = vmatprep.subr.mxu0 0.0
        %1999 = vmatpush1.msra.mxu0 %v1458
        %2000 = vmatprep.subr.mxu0 0.0
        %2001 = vmatpush1.msra.mxu0 %v1455
        %2002 = vmatprep.subr.mxu0 0.0
        %2003 = vmatpush1.msra.mxu0 %v1452
        %2004 = vmatprep.subr.mxu0 0.0
        %2005 = vmatpush1.msra.mxu0 %v1449
        %2006 = vmatprep.subr.mxu0 0.0
        %2007 = vmatpush1.msra.mxu0 %v1446
        %2008 = vmatprep.subr.mxu0 0.0
        %2009 = vmatpush1.msra.mxu0 %v1443
        %2010 = vmatprep.subr.mxu0 0.0
        %2011 = vmatpush1.msra.mxu0 %v1440
        %2012 = vmatprep.subr.mxu0 0.0
        %2013 = vmatpush1.msra.mxu0 %v1437
        %2014 = vmatprep.subr.mxu0 0.0
        %2015 = vmatpush1.msra.mxu0 %v1434
        %2016 = vmatprep.subr.mxu0 0.0
        %2017 = vmatpush1.msra.mxu0 %v1431
        %2018 = vmatprep.subr.mxu0 0.0
        %2019 = vmatpush1.msra.mxu0 %v1428
        %2020 = vmatprep.subr.mxu0 0.0
        %2021 = vmatpush1.msra.mxu0 %v1425
        %2022 = vmatprep.subr.mxu0 0.0
        %2023 = vmatpush1.msra.mxu0 %v1422
        %2024 = vmatprep.subr.mxu0 0.0
        %2025 = vmatpush1.msra.mxu0 %v1419
        %2026 = vmatprep.subr.mxu0 0.0
        %2027 = vmatpush1.msra.mxu0 %v1416
        %2028 = vmatprep.subr.mxu0 0.0
        %2029 = vmatpush1.msra.mxu0 %v1413
        %2030 = vmatprep.subr.mxu0 0.0
        %2031 = vmatpush2.msra.mxu0 0.0
        %2032 = vmatprep.subr.mxu0 0.0
        %2033 = vmatpush2.msra.mxu0 0.0
        %2034 = vmatprep.subr.mxu0 0.0
        %2035 = vmatpush2.msra.mxu0 0.0
        %2036 = vmatprep.subr.mxu0 0.0
        %2037 = vmatpush2.msra.mxu0 0.0
        %2038 = vmatprep.subr.mxu0 0.0
        %2039 = vmatpush2.msra.mxu0 0.0
        %2040 = vmatprep.subr.mxu0 0.0
        %2041 = vmatpush2.msra.mxu0 0.0
        %2042 = vmatprep.subr.mxu0 0.0
        %2043 = vmatpush2.msra.mxu0 0.0
        %2044 = vmatprep.subr.mxu0 0.0
        %2045 = vmatpush2.msra.mxu0 0.0
        %2046 = vmatprep.subr.mxu0 0.0
        %2047 = vmatpush2.msra.mxu0 0.0
        %2048 = vmatprep.subr.mxu0 0.0
        %2049 = vmatpush2.msra.mxu0 0.0
        %2050 = vmatprep.subr.mxu0 0.0
        %2051 = vmatpush2.msra.mxu0 0.0
        %2052 = vmatprep.subr.mxu0 0.0
        %2053 = vmatpush2.msra.mxu0 0.0
        %2054 = vmatprep.subr.mxu0 0.0
        %2055 = vmatpush2.msra.mxu0 0.0
        %2056 = vmatprep.subr.mxu0 0.0
        %2057 = vmatpush2.msra.mxu0 0.0
        %2058 = vmatprep.subr.mxu0 0.0
        %2059 = vmatpush2.msra.mxu0 %v1464
        %2060 = vmatprep.subr.mxu0 0.0
        %2061 = vmatpush2.msra.mxu0 %v1461
        %2062 = vmatprep.mubr.f32.mxu0 %v1484
        %2063 = vmatmul.mubr.f32.gmra.mxu0 %v1253
        %v2064 = vpop.f32.mrf.mxu0
        %v2065 = vadd.f32 %v1920, %v2064
        %v2066 = vpop.f32.mrf.mxu0
        %2067 = vmatprep.mubr.f32.mxu0 %v1487
        %2068 = vmatmul.mubr.f32.gmra.mxu0 %v1257
        %v2069 = vpop.f32.mrf.mxu0
        %v2070 = vadd.f32 %v1925, %v2069
        %v2071 = vpop.f32.mrf.mxu0
        %2072 = vmatprep.mubr.f32.mxu0 %v1490
        %2073 = vmatmul.mubr.f32.gmra.mxu0 %v1261
        %v2074 = vpop.f32.mrf.mxu0
        %v2075 = vadd.f32 %v1930, %v2074
        %v2076 = vpop.f32.mrf.mxu0
        %2077 = vmatprep.mubr.f32.mxu0 %v1493
        %2078 = vmatmul.mubr.f32.gmra.mxu0 %v1265
        %v2079 = vpop.f32.mrf.mxu0
        %v2080 = vadd.f32 %v1935, %v2079
        %v2081 = vpop.f32.mrf.mxu0
        %2082 = vmatprep.mubr.f32.mxu0 %v1496
        %2083 = vmatmul.mubr.f32.gmra.mxu0 %v1269
        %v2084 = vpop.f32.mrf.mxu0
        %v2085 = vadd.f32 %v1940, %v2084
        %v2086 = vpop.f32.mrf.mxu0
        %2087 = vmatprep.mubr.f32.mxu0 %v1499
        %2088 = vmatmul.mubr.f32.gmra.mxu0 %v1273
        %v2089 = vpop.f32.mrf.mxu0
        %v2090 = vadd.f32 %v1945, %v2089
        %v2091 = vpop.f32.mrf.mxu0
        %2092 = vmatprep.mubr.f32.mxu0 %v1502
        %2093 = vmatmul.mubr.f32.gmra.mxu0 %v1277
        %v2094 = vpop.f32.mrf.mxu0
        %v2095 = vadd.f32 %v1950, %v2094
        %v2096 = vpop.f32.mrf.mxu0
        %2097 = vmatprep.mubr.f32.mxu0 %v1505
        %2098 = vmatmul.mubr.f32.gmra.mxu0 %v1281
        %v2099 = vpop.f32.mrf.mxu0
        %v2100 = vadd.f32 %v1955, %v2099
        %v2101 = vpop.f32.mrf.mxu0
        %2102 = vmatprep.mubr.f32.mxu0 %v1508
        %2103 = vmatmul.mubr.f32.gmra.mxu0 %v1285
        %v2104 = vpop.f32.mrf.mxu0
        %v2105 = vadd.f32 %v1960, %v2104
        %v2106 = vpop.f32.mrf.mxu0
        %2107 = vmatprep.mubr.f32.mxu0 %v1511
        %2108 = vmatmul.mubr.f32.gmra.mxu0 %v1289
        %v2109 = vpop.f32.mrf.mxu0
        %v2110 = vadd.f32 %v1965, %v2109
        %v2111 = vpop.f32.mrf.mxu0
        %2112 = vmatprep.mubr.f32.mxu0 %v1514
        %2113 = vmatmul.mubr.f32.gmra.mxu0 %v1293
        %v2114 = vpop.f32.mrf.mxu0
        %v2115 = vadd.f32 %v1970, %v2114
        %v2116 = vpop.f32.mrf.mxu0
        %2117 = vmatprep.mubr.f32.mxu0 %v1517
        %2118 = vmatmul.mubr.f32.gmra.mxu0 %v1297
        %v2119 = vpop.f32.mrf.mxu0
        %v2120 = vadd.f32 %v1975, %v2119
        %v2121 = vpop.f32.mrf.mxu0
        %2122 = vmatprep.mubr.f32.mxu0 %v1520
        %2123 = vmatmul.mubr.f32.gmra.mxu0 %v1301
        %v2124 = vpop.f32.mrf.mxu0
        %v2125 = vadd.f32 %v1980, %v2124
        %v2126 = vpop.f32.mrf.mxu0
        %2127 = vmatprep.mubr.f32.mxu0 %v1523
        %2128 = vmatmul.mubr.f32.gmra.mxu0 %v1305
        %v2129 = vpop.f32.mrf.mxu0
        %v2130 = vadd.f32 %v1985, %v2129
        %v2131 = vpop.f32.mrf.mxu0
        %2132 = vmatprep.mubr.f32.mxu0 %v1526
        %2133 = vmatmul.mubr.f32.gmra.mxu0 %v1309
        %v2134 = vpop.f32.mrf.mxu0
        %v2135 = vadd.f32 %v1990, %v2134
        %v2136 = vpop.f32.mrf.mxu0
        %2137 = vmatprep.mubr.f32.mxu0 %v1529
        %2138 = vmatmul.mubr.f32.gmra.mxu0 %v1313
        %v2139 = vpop.f32.mrf.mxu0
        %v2140 = vadd.f32 %v1995, %v2139
        %v2141 = vpop.f32.mrf.mxu0
        %2142 = vdwg.mxu0
        %v2143 = vmax.f32 %v1759, 0.0
        %v2144 = vmax.f32 %v1761, 0.0
        %v2145 = vmax.f32 %v2065, 0.0
        %v2146 = vmax.f32 %v1765, 0.0
        %v2147 = vmax.f32 %v1767, 0.0
        %v2148 = vmax.f32 %v2070, 0.0
        %v2149 = vmax.f32 %v1771, 0.0
        %v2150 = vmax.f32 %v1773, 0.0
        %v2151 = vmax.f32 %v2075, 0.0
        %v2152 = vmax.f32 %v1777, 0.0
        %v2153 = vmax.f32 %v1779, 0.0
        %v2154 = vmax.f32 %v2080, 0.0
        %v2155 = vmax.f32 %v1783, 0.0
        %v2156 = vmax.f32 %v1785, 0.0
        %v2157 = vmax.f32 %v2085, 0.0
        %v2158 = vmax.f32 %v1789, 0.0
        %v2159 = vmax.f32 %v1791, 0.0
        %v2160 = vmax.f32 %v2090, 0.0
        %v2161 = vmax.f32 %v1795, 0.0
        %v2162 = vmax.f32 %v1797, 0.0
        %v2163 = vmax.f32 %v2095, 0.0
        %v2164 = vmax.f32 %v1801, 0.0
        %v2165 = vmax.f32 %v1803, 0.0
        %v2166 = vmax.f32 %v2100, 0.0
        %v2167 = vmax.f32 %v1807, 0.0
        %v2168 = vmax.f32 %v1809, 0.0
        %v2169 = vmax.f32 %v2105, 0.0
        %v2170 = vmax.f32 %v1813, 0.0
        %v2171 = vmax.f32 %v1815, 0.0
        %v2172 = vmax.f32 %v2110, 0.0
        %v2173 = vmax.f32 %v1819, 0.0
        %v2174 = vmax.f32 %v1821, 0.0
        %v2175 = vmax.f32 %v2115, 0.0
        %v2176 = vmax.f32 %v1825, 0.0
        %v2177 = vmax.f32 %v1827, 0.0
        %v2178 = vmax.f32 %v2120, 0.0
        %v2179 = vmax.f32 %v1831, 0.0
        %v2180 = vmax.f32 %v1833, 0.0
        %v2181 = vmax.f32 %v2125, 0.0
        %v2182 = vmax.f32 %v1837, 0.0
        %v2183 = vmax.f32 %v1839, 0.0
        %v2184 = vmax.f32 %v2130, 0.0
        %v2185 = vmax.f32 %v1843, 0.0
        %v2186 = vmax.f32 %v1845, 0.0
        %v2187 = vmax.f32 %v2135, 0.0
        %v2188 = vmax.f32 %v1849, 0.0
        %v2189 = vmax.f32 %v1851, 0.0
        %v2190 = vmax.f32 %v2140, 0.0
        %v2191 = vld [vmem:[%s7] sm:$0x7]
        %v2193 = vlaneseq
        %v2194 = vshrl.u32 %v2193, 7
        %v2195 = vsub.s32 0, %v2194
        %v2196 = vrot.slane %v2191, %v2195
        %v2197 = vlaneseq
        %v2198 = vshrl.u32 %v2197, 7
        %v2199 = vsub.s32 1, %v2198
        %v2200 = vrot.slane %v2191, %v2199
        %v2201 = vlaneseq
        %v2202 = vshrl.u32 %v2201, 7
        %v2203 = vsub.s32 2, %v2202
        %v2204 = vrot.slane %v2191, %v2203
        %v2208 = vmul.f32 %v2143, %v2196
        %v2209 = vmul.f32 %v2144, %v2200
        %v2210 = vmul.f32 %v2145, %v2204
        %v2211 = vmul.f32 %v2146, %v2196
        %v2212 = vmul.f32 %v2147, %v2200
        %v2213 = vmul.f32 %v2148, %v2204
        %v2214 = vmul.f32 %v2149, %v2196
        %v2215 = vmul.f32 %v2150, %v2200
        %v2216 = vmul.f32 %v2151, %v2204
        %v2217 = vmul.f32 %v2152, %v2196
        %v2218 = vmul.f32 %v2153, %v2200
        %v2219 = vmul.f32 %v2154, %v2204
        %v2220 = vmul.f32 %v2155, %v2196
        %v2221 = vmul.f32 %v2156, %v2200
        %v2222 = vmul.f32 %v2157, %v2204
        %v2223 = vmul.f32 %v2158, %v2196
        %v2224 = vmul.f32 %v2159, %v2200
        %v2225 = vmul.f32 %v2160, %v2204
        %v2226 = vmul.f32 %v2161, %v2196
        %v2227 = vmul.f32 %v2162, %v2200
        %v2228 = vmul.f32 %v2163, %v2204
        %v2229 = vmul.f32 %v2164, %v2196
        %v2230 = vmul.f32 %v2165, %v2200
        %v2231 = vmul.f32 %v2166, %v2204
        %v2232 = vmul.f32 %v2167, %v2196
        %v2233 = vmul.f32 %v2168, %v2200
        %v2234 = vmul.f32 %v2169, %v2204
        %v2235 = vmul.f32 %v2170, %v2196
        %v2236 = vmul.f32 %v2171, %v2200
        %v2237 = vmul.f32 %v2172, %v2204
        %v2238 = vmul.f32 %v2173, %v2196
        %v2239 = vmul.f32 %v2174, %v2200
        %v2240 = vmul.f32 %v2175, %v2204
        %v2241 = vmul.f32 %v2176, %v2196
        %v2242 = vmul.f32 %v2177, %v2200
        %v2243 = vmul.f32 %v2178, %v2204
        %v2244 = vmul.f32 %v2179, %v2196
        %v2245 = vmul.f32 %v2180, %v2200
        %v2246 = vmul.f32 %v2181, %v2204
        %v2247 = vmul.f32 %v2182, %v2196
        %v2248 = vmul.f32 %v2183, %v2200
        %v2249 = vmul.f32 %v2184, %v2204
        %v2250 = vmul.f32 %v2185, %v2196
        %v2251 = vmul.f32 %v2186, %v2200
        %v2252 = vmul.f32 %v2187, %v2204
        %v2253 = vmul.f32 %v2188, %v2196
        %v2254 = vmul.f32 %v2189, %v2200
        %v2255 = vmul.f32 %v2190, %v2204
        %v2256 = vadd.f32 %v2208, %v2209
        %vm2257 = vcmask 359424
        %v2258 = vsel %vm2257, %v2210, 0.0
        %v2259 = vadd.f32 %v2256, %v2258
        %2260 = vadd.xlane.f32.xlu0 %v2259
        %v2261 = vpop.xlane.xlu0 %2260
        %v2262 = vadd.f32 %v2211, %v2212
        %v2263 = vsel %vm2257, %v2213, 0.0
        %v2264 = vadd.f32 %v2262, %v2263
        %2265 = vadd.xlane.f32.xlu0 %v2264
        %v2266 = vpop.xlane.xlu0 %2265
        %v2267 = vadd.f32 %v2214, %v2215
        %v2268 = vsel %vm2257, %v2216, 0.0
        %v2269 = vadd.f32 %v2267, %v2268
        %2270 = vadd.xlane.f32.xlu0 %v2269
        %v2271 = vpop.xlane.xlu0 %2270
        %v2272 = vadd.f32 %v2217, %v2218
        %v2273 = vsel %vm2257, %v2219, 0.0
        %v2274 = vadd.f32 %v2272, %v2273
        %2275 = vadd.xlane.f32.xlu0 %v2274
        %v2276 = vpop.xlane.xlu0 %2275
        %v2277 = vadd.f32 %v2220, %v2221
        %v2278 = vsel %vm2257, %v2222, 0.0
        %v2279 = vadd.f32 %v2277, %v2278
        %2280 = vadd.xlane.f32.xlu0 %v2279
        %v2281 = vpop.xlane.xlu0 %2280
        %v2282 = vadd.f32 %v2223, %v2224
        %v2283 = vsel %vm2257, %v2225, 0.0
        %v2284 = vadd.f32 %v2282, %v2283
        %2285 = vadd.xlane.f32.xlu0 %v2284
        %v2286 = vpop.xlane.xlu0 %2285
        %v2287 = vadd.f32 %v2226, %v2227
        %v2288 = vsel %vm2257, %v2228, 0.0
        %v2289 = vadd.f32 %v2287, %v2288
        %2290 = vadd.xlane.f32.xlu0 %v2289
        %v2291 = vpop.xlane.xlu0 %2290
        %v2292 = vadd.f32 %v2229, %v2230
        %v2293 = vsel %vm2257, %v2231, 0.0
        %v2294 = vadd.f32 %v2292, %v2293
        %2295 = vadd.xlane.f32.xlu0 %v2294
        %v2296 = vpop.xlane.xlu0 %2295
        %v2297 = vadd.f32 %v2232, %v2233
        %v2298 = vsel %vm2257, %v2234, 0.0
        %v2299 = vadd.f32 %v2297, %v2298
        %2300 = vadd.xlane.f32.xlu0 %v2299
        %v2301 = vpop.xlane.xlu0 %2300
        %v2302 = vadd.f32 %v2235, %v2236
        %v2303 = vsel %vm2257, %v2237, 0.0
        %v2304 = vadd.f32 %v2302, %v2303
        %2305 = vadd.xlane.f32.xlu0 %v2304
        %v2306 = vpop.xlane.xlu0 %2305
        %v2307 = vadd.f32 %v2238, %v2239
        %v2308 = vsel %vm2257, %v2240, 0.0
        %v2309 = vadd.f32 %v2307, %v2308
        %2310 = vadd.xlane.f32.xlu0 %v2309
        %v2311 = vpop.xlane.xlu0 %2310
        %v2312 = vadd.f32 %v2241, %v2242
        %v2313 = vsel %vm2257, %v2243, 0.0
        %v2314 = vadd.f32 %v2312, %v2313
        %2315 = vadd.xlane.f32.xlu0 %v2314
        %v2316 = vpop.xlane.xlu0 %2315
        %v2317 = vadd.f32 %v2244, %v2245
        %v2318 = vsel %vm2257, %v2246, 0.0
        %v2319 = vadd.f32 %v2317, %v2318
        %2320 = vadd.xlane.f32.xlu0 %v2319
        %v2321 = vpop.xlane.xlu0 %2320
        %v2322 = vadd.f32 %v2247, %v2248
        %v2323 = vsel %vm2257, %v2249, 0.0
        %v2324 = vadd.f32 %v2322, %v2323
        %2325 = vadd.xlane.f32.xlu0 %v2324
        %v2326 = vpop.xlane.xlu0 %2325
        %v2327 = vadd.f32 %v2250, %v2251
        %v2328 = vsel %vm2257, %v2252, 0.0
        %v2329 = vadd.f32 %v2327, %v2328
        %2330 = vadd.xlane.f32.xlu0 %v2329
        %v2331 = vpop.xlane.xlu0 %2330
        %v2332 = vadd.f32 %v2253, %v2254
        %v2333 = vsel %vm2257, %v2255, 0.0
        %v2334 = vadd.f32 %v2332, %v2333
        %2335 = vadd.xlane.f32.xlu0 %v2334
        %v2336 = vpop.xlane.xlu0 %2335
        %v2337 = vld [vmem:[#allocation2] sm:$0x1]
        %v2339 = vlaneseq
        %v2340 = vshrl.u32 %v2339, 7
        %v2341 = vsub.s32 0, %v2340
        %v2342 = vrot.slane %v2337, %v2341
        %v2344 = vadd.f32 %v2261, %v2342
        %v2345 = vadd.f32 %v2266, %v2342
        %v2346 = vadd.f32 %v2271, %v2342
        %v2347 = vadd.f32 %v2276, %v2342
        %v2348 = vadd.f32 %v2281, %v2342
        %v2349 = vadd.f32 %v2286, %v2342
        %v2350 = vadd.f32 %v2291, %v2342
        %v2351 = vadd.f32 %v2296, %v2342
        %v2352 = vadd.f32 %v2301, %v2342
        %v2353 = vadd.f32 %v2306, %v2342
        %v2354 = vadd.f32 %v2311, %v2342
        %v2355 = vadd.f32 %v2316, %v2342
        %v2356 = vadd.f32 %v2321, %v2342
        %v2357 = vadd.f32 %v2326, %v2342
        %v2358 = vadd.f32 %v2331, %v2342
        %v2359 = vadd.f32 %v2336, %v2342
        %vm2360 = vcmask 7168
        %2361 = vst.msk [vmem:[%s373] sm:$0xff] %vm2360, %v2344
        %2362 = vst.msk [vmem:[%s373 + $0x8] sm:$0xff] %vm2360, %v2345
        %2363 = vst.msk [vmem:[%s373 + $0x10] sm:$0xff] %vm2360, %v2346
        %2364 = vst.msk [vmem:[%s373 + $0x18] sm:$0xff] %vm2360, %v2347
        %2365 = vst.msk [vmem:[%s373 + $0x20] sm:$0xff] %vm2360, %v2348
        %2366 = vst.msk [vmem:[%s373 + $0x28] sm:$0xff] %vm2360, %v2349
        %2367 = vst.msk [vmem:[%s373 + $0x30] sm:$0xff] %vm2360, %v2350
        %2368 = vst.msk [vmem:[%s373 + $0x38] sm:$0xff] %vm2360, %v2351
        %2369 = vst.msk [vmem:[%s373 + $0x40] sm:$0xff] %vm2360, %v2352
        %2370 = vst.msk [vmem:[%s373 + $0x48] sm:$0xff] %vm2360, %v2353
        %2371 = vst.msk [vmem:[%s373 + $0x50] sm:$0xff] %vm2360, %v2354
        %2372 = vst.msk [vmem:[%s373 + $0x58] sm:$0xff] %vm2360, %v2355
        %2373 = vst.msk [vmem:[%s373 + $0x60] sm:$0xff] %vm2360, %v2356
        %2374 = vst.msk [vmem:[%s373 + $0x68] sm:$0xff] %vm2360, %v2357
        %2375 = vst.msk [vmem:[%s373 + $0x70] sm:$0xff] %vm2360, %v2358
        %2376 = vst.msk [vmem:[%s373 + $0x78] sm:$0xff] %vm2360, %v2359
        %s2377 = smul.u32 16, %s23
        %p2378 = scmp.lt.s32.totalorder %s2377, 31
        %s2379 = scalar_select %p2378, %s2377, 31
        %s2380 = smul.addr %s2379, 8
        %s2381 = scalar_lea.vmem %s9, %s2380
        // Predicated region
        $region61: #{critic_forward.1} parent=55 // pred_check
          %p2382 = pneg %p240
        $region62: #{critic_forward.1} parent=55 // pred_check_branch
          %2384 = sbr.rel (%p2382) target = $region64
        $region63: #{critic_forward.1} parent=55 // pred_region
          %s2385 = smul.u32 16, %s23
        $region64: #{critic_forward.1} parent=55 // pred_fallthru
          _
      $region56: #{critic_forward.1} parent=5 // pred_fallthru
        _
      %p2386 = scmp.le.s32.totalorder 2, %s18
      // Predicated region
      $region65: #{critic_forward.1} parent=5 // pred_check
        %p2387 = pneg %p2386
      $region66: #{critic_forward.1} parent=5 // pred_check_branch
        %2389 = sbr.rel (%p2387) target = $region68
      $region67: #{critic_forward.1} parent=5 // pred_region
        %s2390 = ssub.s32 %s18, 2
        // Predicated region
        $region69: #{critic_forward.1} parent=67 // pred_check
          %p2391 = pneg %p246
        $region70: #{critic_forward.1} parent=67 // pred_check_branch
          %2393 = sbr.rel (%p2391) target = $region72
        $region71: #{critic_forward.1} parent=67 // pred_region
          %s2394 = smul.u32 16, %s24
          %p2395 = scmp.lt.s32.totalorder %s2394, 31
          %s2396 = scalar_select %p2395, %s2394, 31
          %s2397 = smul.addr %s2396, 8
          %s2398 = scalar_lea.vmem %s9, %s2397
        $region72: #{critic_forward.1} parent=67 // pred_fallthru
          _
      $region68: #{critic_forward.1} parent=5 // pred_fallthru
        _
    $region6: #{critic_forward.1} parent=1 // loop_footer
      %s22 = sadd.s32 1, %s18
    $region7: #{critic_forward.1} parent=1 // loop_footer_branch
      %17 = sbr.rel target = $region3
    $region8: #{critic_forward.1} parent=1 // loop_exit
      _
    %2399 = vsyncpa [#allocation4], 1
    %s2400 = scalar_lea.sflag [#allocation4], 1
    %2401 = vsyncpa %s2400, 1

</llo_original>
